<compile_context>
chip_gen: v7x
topology: tpu7x:2x2x1
jax: 0.10.0
libtpu: 0.0.40
codegen_flags: <defaults>
</compile_context>

<pallas_src>
import jax
import jax.numpy as jnp
from jax.experimental import pallas as pl
from jax.experimental.pallas import tpu as pltpu


def _attention_alpha_kernel(x_ref, w1_ref, b1_ref, v_ref, b2_ref, o_ref, s_ref):
    # x_ref:  (BB, C, T)  block of batch samples
    # w1_ref: (H, C)      first_affine weight (kernel dim squeezed), resident
    # b1_ref: (H, 1)      first_affine bias
    # v_ref:  (H, 1)      last_affine weight, as a column
    # b2_ref: (1, 1)      last_affine bias
    # o_ref:  (BB, T)     softmax over T, one row per sample
    # s_ref:  (BB, T)     f32 VMEM scratch for the pre-softmax scores
    BB = x_ref.shape[0]

    # Hoist resident parameters out of the unrolled per-sample loop.
    w1 = w1_ref[...]          # (H, C)
    b1 = b1_ref[...]          # (H, 1)
    v = v_ref[...]            # (H, 1)
    b2 = b2_ref[...]          # (1, 1)

    for b in range(BB):       # static unroll over the batch block
        xb = x_ref[b]         # (C, T)
        # first_affine + ReLU (MXU matmul, f32 accumulate)
        h = jnp.dot(w1, xb, preferred_element_type=jnp.float32) + b1
        h = jnp.maximum(h, 0.0)                                  # (H, T)
        # last_affine: (1,H)@(H,T) is an M=1 matmul -> do it on VPU (mul) + XLU
        # (sublane reduce) instead of burning an MXU pass.
        sb = jnp.sum(v * h, axis=0, keepdims=True) + b2          # (1, T)
        s_ref[pl.ds(b, 1), :] = sb

    # Numerically-stable softmax over frames (PyTorch dim=2), vectorized over
    # the whole batch block.
    s = s_ref[...]                                               # (BB, T)
    s = s - jnp.max(s, axis=-1, keepdims=True)
    e = jnp.exp(s)
    d = jnp.sum(e, axis=-1, keepdims=True)
    r = pl.reciprocal(d, approx=True)                            # EUP slot
    r = r * (2.0 - d * r)                                        # one Newton step -> f32 accuracy
    o_ref[...] = (e * r).astype(o_ref.dtype)


def attention_alpha(x, w1, b1, v, b2, *, block_b=8):
    """x: (B, C, T) float32; w1: (H, C); b1: (H, 1); v: (H, 1); b2: (1, 1).

    Returns softmax attention weights of shape (B, 1, T).
    `block_b` (samples per grid step) should be a multiple of 8 when it is
    smaller than the batch; raise it for large B (VMEM per step is tiny here).
    """
    B, C, T = x.shape
    H = w1.shape[0]

    BB = block_b if B > block_b else B          # B <= block_b -> single full block
    Bp = pl.cdiv(B, BB) * BB
    if Bp != B:
        # Padded samples produce a harmless uniform softmax row; sliced off below.
        x = jnp.pad(x, ((0, Bp - B), (0, 0), (0, 0)))

    out = pl.pallas_call(
        _attention_alpha_kernel,
        out_shape=jax.ShapeDtypeStruct((Bp, T), x.dtype),
        grid=(Bp // BB,),
        in_specs=[
            pl.BlockSpec((BB, C, T), lambda i: (i, 0, 0)),
            pl.BlockSpec((H, C), lambda i: (0, 0)),
            pl.BlockSpec((H, 1), lambda i: (0, 0)),
            pl.BlockSpec((H, 1), lambda i: (0, 0)),
            pl.BlockSpec((1, 1), lambda i: (0, 0)),
        ],
        out_specs=pl.BlockSpec((BB, T), lambda i: (i, 0)),
        scratch_shapes=[pltpu.VMEM((BB, T), jnp.float32)],
        compiler_params=pltpu.CompilerParams(dimension_semantics=("parallel",)),
    )(x, w1, b1, v, b2)

    return out[:B].reshape(B, 1, T)


def reference(x, w1, b1, v, b2):
    # pure-JAX reference of the PyTorch forward
    h = jax.nn.relu(jnp.einsum("hc,bct->bht", w1, x) + b1[None, :, :])   # (B, H, T)
    s = jnp.einsum("bht,ho->bot", h, v) + b2[None, :, :]                 # (B, 1, T)
    return jax.nn.softmax(s, axis=2)


if __name__ == "__main__":
    # Small shapes consistent with the module: inputs [B, input_dim, frames].
    # B=16 gives two grid steps with the default block_b=8 (keeps both v7x TCs busy).
    B, C, T, H = 16, 16, 16, 32  # input_dim=16, hidden_size=32, num_head=1

    key = jax.random.PRNGKey(0)
    kx, kw1, kv = jax.random.split(key, 3)

    x = jax.random.normal(kx, (B, C, T), dtype=jnp.float32)

    # TdnnAffine.init_weight: weight ~ N(0, 0.01), bias = 0.
    # PyTorch weight shapes: first (H, C, 1), last (1, H, 1) -> kernel dim squeezed;
    # the last_affine weight is passed as a column vector (H, 1).
    w1 = 0.01 * jax.random.normal(kw1, (H, C), dtype=jnp.float32)
    b1 = jnp.zeros((H, 1), dtype=jnp.float32)
    v = 0.01 * jax.random.normal(kv, (H, 1), dtype=jnp.float32)
    b2 = jnp.zeros((1, 1), dtype=jnp.float32)

    out = attention_alpha(x, w1, b1, v, b2)
    out = jax.block_until_ready(out)

    ref = reference(x, w1, b1, v, b2)
    assert out.shape == (B, 1, T)
    assert jnp.allclose(out, ref, atol=1e-5, rtol=1e-5)
    # softmax rows sum to 1
    assert jnp.allclose(jnp.sum(out, axis=2), 1.0, atol=1e-5)

    print("KERNEL_OK")
</pallas_src>

<mosaic_0001>
module attributes {stable_mosaic.version = 11 : i64} {
  func.func @_attention_alpha_kernel(%arg0: i32, %arg1: memref<8x16x16xf32, #tpu.memory_space<vmem>>, %arg2: memref<32x16xf32, #tpu.memory_space<vmem>>, %arg3: memref<32x1xf32, #tpu.memory_space<vmem>>, %arg4: memref<32x1xf32, #tpu.memory_space<vmem>>, %arg5: memref<1x1xf32, #tpu.memory_space<vmem>>, %arg6: memref<8x16xf32, #tpu.memory_space<vmem>>, %arg7: memref<8x16xf32, #tpu.memory_space<vmem>>) attributes {dimension_semantics = [#tpu.dimension_semantics<parallel>], iteration_bounds = array<i64: 2>, scalar_prefetch = 0 : i64, scratch_operands = 1 : i64, tpu.core_type = #tpu.core_type<tc>, window_params = [{transform_indices = @transform_0, window_bounds = array<i64: 8, 16, 16>}, {pipeline_mode = #tpu.pipeline_mode<synchronous>, transform_indices = @transform_1, window_bounds = array<i64: 32, 16>}, {pipeline_mode = #tpu.pipeline_mode<synchronous>, transform_indices = @transform_2, window_bounds = array<i64: 32, 1>}, {pipeline_mode = #tpu.pipeline_mode<synchronous>, transform_indices = @transform_3, window_bounds = array<i64: 32, 1>}, {pipeline_mode = #tpu.pipeline_mode<synchronous>, transform_indices = @transform_4, window_bounds = array<i64: 1, 1>}, {transform_indices = @transform_5, window_bounds = array<i64: 8, 16>}]} {
    %c0 = arith.constant 0 : index
    %c0_0 = arith.constant 0 : index
    %0 = vector.load %arg2[%c0, %c0_0] : memref<32x16xf32, #tpu.memory_space<vmem>>, vector<32x16xf32>
    %c0_1 = arith.constant 0 : index
    %c0_2 = arith.constant 0 : index
    %1 = vector.load %arg3[%c0_1, %c0_2] : memref<32x1xf32, #tpu.memory_space<vmem>>, vector<32x1xf32>
    %c0_3 = arith.constant 0 : index
    %c0_4 = arith.constant 0 : index
    %2 = vector.load %arg4[%c0_3, %c0_4] : memref<32x1xf32, #tpu.memory_space<vmem>>, vector<32x1xf32>
    %c0_5 = arith.constant 0 : index
    %c0_6 = arith.constant 0 : index
    %3 = vector.load %arg5[%c0_5, %c0_6] : memref<1x1xf32, #tpu.memory_space<vmem>>, vector<1x1xf32>
    %c0_7 = arith.constant 0 : index
    %c0_8 = arith.constant 0 : index
    %c0_9 = arith.constant 0 : index
    %4 = vector.load %arg1[%c0_7, %c0_8, %c0_9] : memref<8x16x16xf32, #tpu.memory_space<vmem>>, vector<1x16x16xf32>
    %5 = vector.shape_cast %4 : vector<1x16x16xf32> to vector<16x16xf32>
    %cst = arith.constant dense<0.000000e+00> : vector<32x16xf32>
    %6 = tpu.matmul %0, %5, %cst {dimension_numbers = #tpu.dot_dimension_numbers<[1], [0], [0], [1], [0, 0, 1, 1], [], []>} : vector<32x16xf32>, vector<16x16xf32>, vector<32x16xf32> -> vector<32x16xf32>
    %7 = vector.broadcast %1 : vector<32x1xf32> to vector<32x16xf32>
    %8 = arith.addf %6, %7 : vector<32x16xf32>
    %cst_10 = arith.constant 0.000000e+00 : f32
    %9 = vector.broadcast %cst_10 : f32 to vector<32x16xf32>
    %10 = arith.maximumf %8, %9 : vector<32x16xf32>
    %11 = vector.broadcast %2 : vector<32x1xf32> to vector<32x16xf32>
    %12 = arith.mulf %11, %10 : vector<32x16xf32>
    %cst_11 = arith.constant dense<0.000000e+00> : vector<16xf32>
    %13 = vector.multi_reduction <add>, %12, %cst_11 [0] : vector<32x16xf32> to vector<16xf32>
    %14 = vector.shape_cast %13 : vector<16xf32> to vector<1x16xf32>
    %15 = vector.broadcast %3 : vector<1x1xf32> to vector<1x16xf32>
    %16 = arith.addf %14, %15 : vector<1x16xf32>
    %c0_12 = arith.constant 0 : index
    %c0_13 = arith.constant 0 : index
    %17 = vector.load %arg7[%c0_12, %c0_13] : memref<8x16xf32, #tpu.memory_space<vmem>>, vector<1x16xf32>
    tpu.vector_store %arg7[%c0_12, %c0_13], %16 {strides = array<i32>} : memref<8x16xf32, #tpu.memory_space<vmem>>, vector<1x16xf32>,
    %c1 = arith.constant 1 : index
    %c0_14 = arith.constant 0 : index
    %c0_15 = arith.constant 0 : index
    %18 = vector.load %arg1[%c1, %c0_14, %c0_15] : memref<8x16x16xf32, #tpu.memory_space<vmem>>, vector<1x16x16xf32>
    %19 = vector.shape_cast %18 : vector<1x16x16xf32> to vector<16x16xf32>
    %cst_16 = arith.constant dense<0.000000e+00> : vector<32x16xf32>
    %20 = tpu.matmul %0, %19, %cst_16 {dimension_numbers = #tpu.dot_dimension_numbers<[1], [0], [0], [1], [0, 0, 1, 1], [], []>} : vector<32x16xf32>, vector<16x16xf32>, vector<32x16xf32> -> vector<32x16xf32>
    %21 = vector.broadcast %1 : vector<32x1xf32> to vector<32x16xf32>
    %22 = arith.addf %20, %21 : vector<32x16xf32>
    %cst_17 = arith.constant 0.000000e+00 : f32
    %23 = vector.broadcast %cst_17 : f32 to vector<32x16xf32>
    %24 = arith.maximumf %22, %23 : vector<32x16xf32>
    %25 = vector.broadcast %2 : vector<32x1xf32> to vector<32x16xf32>
    %26 = arith.mulf %25, %24 : vector<32x16xf32>
    %cst_18 = arith.constant dense<0.000000e+00> : vector<16xf32>
    %27 = vector.multi_reduction <add>, %26, %cst_18 [0] : vector<32x16xf32> to vector<16xf32>
    %28 = vector.shape_cast %27 : vector<16xf32> to vector<1x16xf32>
    %29 = vector.broadcast %3 : vector<1x1xf32> to vector<1x16xf32>
    %30 = arith.addf %28, %29 : vector<1x16xf32>
    %c1_19 = arith.constant 1 : index
    %c0_20 = arith.constant 0 : index
    %31 = vector.load %arg7[%c1_19, %c0_20] : memref<8x16xf32, #tpu.memory_space<vmem>>, vector<1x16xf32>
    tpu.vector_store %arg7[%c1_19, %c0_20], %30 {strides = array<i32>} : memref<8x16xf32, #tpu.memory_space<vmem>>, vector<1x16xf32>,
    %c2 = arith.constant 2 : index
    %c0_21 = arith.constant 0 : index
    %c0_22 = arith.constant 0 : index
    %32 = vector.load %arg1[%c2, %c0_21, %c0_22] : memref<8x16x16xf32, #tpu.memory_space<vmem>>, vector<1x16x16xf32>
    %33 = vector.shape_cast %32 : vector<1x16x16xf32> to vector<16x16xf32>
    %cst_23 = arith.constant dense<0.000000e+00> : vector<32x16xf32>
    %34 = tpu.matmul %0, %33, %cst_23 {dimension_numbers = #tpu.dot_dimension_numbers<[1], [0], [0], [1], [0, 0, 1, 1], [], []>} : vector<32x16xf32>, vector<16x16xf32>, vector<32x16xf32> -> vector<32x16xf32>
    %35 = vector.broadcast %1 : vector<32x1xf32> to vector<32x16xf32>
    %36 = arith.addf %34, %35 : vector<32x16xf32>
    %cst_24 = arith.constant 0.000000e+00 : f32
    %37 = vector.broadcast %cst_24 : f32 to vector<32x16xf32>
    %38 = arith.maximumf %36, %37 : vector<32x16xf32>
    %39 = vector.broadcast %2 : vector<32x1xf32> to vector<32x16xf32>
    %40 = arith.mulf %39, %38 : vector<32x16xf32>
    %cst_25 = arith.constant dense<0.000000e+00> : vector<16xf32>
    %41 = vector.multi_reduction <add>, %40, %cst_25 [0] : vector<32x16xf32> to vector<16xf32>
    %42 = vector.shape_cast %41 : vector<16xf32> to vector<1x16xf32>
    %43 = vector.broadcast %3 : vector<1x1xf32> to vector<1x16xf32>
    %44 = arith.addf %42, %43 : vector<1x16xf32>
    %c2_26 = arith.constant 2 : index
    %c0_27 = arith.constant 0 : index
    %45 = vector.load %arg7[%c2_26, %c0_27] : memref<8x16xf32, #tpu.memory_space<vmem>>, vector<1x16xf32>
    tpu.vector_store %arg7[%c2_26, %c0_27], %44 {strides = array<i32>} : memref<8x16xf32, #tpu.memory_space<vmem>>, vector<1x16xf32>,
    %c3 = arith.constant 3 : index
    %c0_28 = arith.constant 0 : index
    %c0_29 = arith.constant 0 : index
    %46 = vector.load %arg1[%c3, %c0_28, %c0_29] : memref<8x16x16xf32, #tpu.memory_space<vmem>>, vector<1x16x16xf32>
    %47 = vector.shape_cast %46 : vector<1x16x16xf32> to vector<16x16xf32>
    %cst_30 = arith.constant dense<0.000000e+00> : vector<32x16xf32>
    %48 = tpu.matmul %0, %47, %cst_30 {dimension_numbers = #tpu.dot_dimension_numbers<[1], [0], [0], [1], [0, 0, 1, 1], [], []>} : vector<32x16xf32>, vector<16x16xf32>, vector<32x16xf32> -> vector<32x16xf32>
    %49 = vector.broadcast %1 : vector<32x1xf32> to vector<32x16xf32>
    %50 = arith.addf %48, %49 : vector<32x16xf32>
    %cst_31 = arith.constant 0.000000e+00 : f32
    %51 = vector.broadcast %cst_31 : f32 to vector<32x16xf32>
    %52 = arith.maximumf %50, %51 : vector<32x16xf32>
    %53 = vector.broadcast %2 : vector<32x1xf32> to vector<32x16xf32>
    %54 = arith.mulf %53, %52 : vector<32x16xf32>
    %cst_32 = arith.constant dense<0.000000e+00> : vector<16xf32>
    %55 = vector.multi_reduction <add>, %54, %cst_32 [0] : vector<32x16xf32> to vector<16xf32>
    %56 = vector.shape_cast %55 : vector<16xf32> to vector<1x16xf32>
    %57 = vector.broadcast %3 : vector<1x1xf32> to vector<1x16xf32>
    %58 = arith.addf %56, %57 : vector<1x16xf32>
    %c3_33 = arith.constant 3 : index
    %c0_34 = arith.constant 0 : index
    %59 = vector.load %arg7[%c3_33, %c0_34] : memref<8x16xf32, #tpu.memory_space<vmem>>, vector<1x16xf32>
    tpu.vector_store %arg7[%c3_33, %c0_34], %58 {strides = array<i32>} : memref<8x16xf32, #tpu.memory_space<vmem>>, vector<1x16xf32>,
    %c4 = arith.constant 4 : index
    %c0_35 = arith.constant 0 : index
    %c0_36 = arith.constant 0 : index
    %60 = vector.load %arg1[%c4, %c0_35, %c0_36] : memref<8x16x16xf32, #tpu.memory_space<vmem>>, vector<1x16x16xf32>
    %61 = vector.shape_cast %60 : vector<1x16x16xf32> to vector<16x16xf32>
    %cst_37 = arith.constant dense<0.000000e+00> : vector<32x16xf32>
    %62 = tpu.matmul %0, %61, %cst_37 {dimension_numbers = #tpu.dot_dimension_numbers<[1], [0], [0], [1], [0, 0, 1, 1], [], []>} : vector<32x16xf32>, vector<16x16xf32>, vector<32x16xf32> -> vector<32x16xf32>
    %63 = vector.broadcast %1 : vector<32x1xf32> to vector<32x16xf32>
    %64 = arith.addf %62, %63 : vector<32x16xf32>
    %cst_38 = arith.constant 0.000000e+00 : f32
    %65 = vector.broadcast %cst_38 : f32 to vector<32x16xf32>
    %66 = arith.maximumf %64, %65 : vector<32x16xf32>
    %67 = vector.broadcast %2 : vector<32x1xf32> to vector<32x16xf32>
    %68 = arith.mulf %67, %66 : vector<32x16xf32>
    %cst_39 = arith.constant dense<0.000000e+00> : vector<16xf32>
    %69 = vector.multi_reduction <add>, %68, %cst_39 [0] : vector<32x16xf32> to vector<16xf32>
    %70 = vector.shape_cast %69 : vector<16xf32> to vector<1x16xf32>
    %71 = vector.broadcast %3 : vector<1x1xf32> to vector<1x16xf32>
    %72 = arith.addf %70, %71 : vector<1x16xf32>
    %c4_40 = arith.constant 4 : index
    %c0_41 = arith.constant 0 : index
    %73 = vector.load %arg7[%c4_40, %c0_41] : memref<8x16xf32, #tpu.memory_space<vmem>>, vector<1x16xf32>
    tpu.vector_store %arg7[%c4_40, %c0_41], %72 {strides = array<i32>} : memref<8x16xf32, #tpu.memory_space<vmem>>, vector<1x16xf32>,
    %c5 = arith.constant 5 : index
    %c0_42 = arith.constant 0 : index
    %c0_43 = arith.constant 0 : index
    %74 = vector.load %arg1[%c5, %c0_42, %c0_43] : memref<8x16x16xf32, #tpu.memory_space<vmem>>, vector<1x16x16xf32>
    %75 = vector.shape_cast %74 : vector<1x16x16xf32> to vector<16x16xf32>
    %cst_44 = arith.constant dense<0.000000e+00> : vector<32x16xf32>
    %76 = tpu.matmul %0, %75, %cst_44 {dimension_numbers = #tpu.dot_dimension_numbers<[1], [0], [0], [1], [0, 0, 1, 1], [], []>} : vector<32x16xf32>, vector<16x16xf32>, vector<32x16xf32> -> vector<32x16xf32>
    %77 = vector.broadcast %1 : vector<32x1xf32> to vector<32x16xf32>
    %78 = arith.addf %76, %77 : vector<32x16xf32>
    %cst_45 = arith.constant 0.000000e+00 : f32
    %79 = vector.broadcast %cst_45 : f32 to vector<32x16xf32>
    %80 = arith.maximumf %78, %79 : vector<32x16xf32>
    %81 = vector.broadcast %2 : vector<32x1xf32> to vector<32x16xf32>
    %82 = arith.mulf %81, %80 : vector<32x16xf32>
    %cst_46 = arith.constant dense<0.000000e+00> : vector<16xf32>
    %83 = vector.multi_reduction <add>, %82, %cst_46 [0] : vector<32x16xf32> to vector<16xf32>
    %84 = vector.shape_cast %83 : vector<16xf32> to vector<1x16xf32>
    %85 = vector.broadcast %3 : vector<1x1xf32> to vector<1x16xf32>
    %86 = arith.addf %84, %85 : vector<1x16xf32>
    %c5_47 = arith.constant 5 : index
    %c0_48 = arith.constant 0 : index
    %87 = vector.load %arg7[%c5_47, %c0_48] : memref<8x16xf32, #tpu.memory_space<vmem>>, vector<1x16xf32>
    tpu.vector_store %arg7[%c5_47, %c0_48], %86 {strides = array<i32>} : memref<8x16xf32, #tpu.memory_space<vmem>>, vector<1x16xf32>,
    %c6 = arith.constant 6 : index
    %c0_49 = arith.constant 0 : index
    %c0_50 = arith.constant 0 : index
    %88 = vector.load %arg1[%c6, %c0_49, %c0_50] : memref<8x16x16xf32, #tpu.memory_space<vmem>>, vector<1x16x16xf32>
    %89 = vector.shape_cast %88 : vector<1x16x16xf32> to vector<16x16xf32>
    %cst_51 = arith.constant dense<0.000000e+00> : vector<32x16xf32>
    %90 = tpu.matmul %0, %89, %cst_51 {dimension_numbers = #tpu.dot_dimension_numbers<[1], [0], [0], [1], [0, 0, 1, 1], [], []>} : vector<32x16xf32>, vector<16x16xf32>, vector<32x16xf32> -> vector<32x16xf32>
    %91 = vector.broadcast %1 : vector<32x1xf32> to vector<32x16xf32>
    %92 = arith.addf %90, %91 : vector<32x16xf32>
    %cst_52 = arith.constant 0.000000e+00 : f32
    %93 = vector.broadcast %cst_52 : f32 to vector<32x16xf32>
    %94 = arith.maximumf %92, %93 : vector<32x16xf32>
    %95 = vector.broadcast %2 : vector<32x1xf32> to vector<32x16xf32>
    %96 = arith.mulf %95, %94 : vector<32x16xf32>
    %cst_53 = arith.constant dense<0.000000e+00> : vector<16xf32>
    %97 = vector.multi_reduction <add>, %96, %cst_53 [0] : vector<32x16xf32> to vector<16xf32>
    %98 = vector.shape_cast %97 : vector<16xf32> to vector<1x16xf32>
    %99 = vector.broadcast %3 : vector<1x1xf32> to vector<1x16xf32>
    %100 = arith.addf %98, %99 : vector<1x16xf32>
    %c6_54 = arith.constant 6 : index
    %c0_55 = arith.constant 0 : index
    %101 = vector.load %arg7[%c6_54, %c0_55] : memref<8x16xf32, #tpu.memory_space<vmem>>, vector<1x16xf32>
    tpu.vector_store %arg7[%c6_54, %c0_55], %100 {strides = array<i32>} : memref<8x16xf32, #tpu.memory_space<vmem>>, vector<1x16xf32>,
    %c7 = arith.constant 7 : index
    %c0_56 = arith.constant 0 : index
    %c0_57 = arith.constant 0 : index
    %102 = vector.load %arg1[%c7, %c0_56, %c0_57] : memref<8x16x16xf32, #tpu.memory_space<vmem>>, vector<1x16x16xf32>
    %103 = vector.shape_cast %102 : vector<1x16x16xf32> to vector<16x16xf32>
    %cst_58 = arith.constant dense<0.000000e+00> : vector<32x16xf32>
    %104 = tpu.matmul %0, %103, %cst_58 {dimension_numbers = #tpu.dot_dimension_numbers<[1], [0], [0], [1], [0, 0, 1, 1], [], []>} : vector<32x16xf32>, vector<16x16xf32>, vector<32x16xf32> -> vector<32x16xf32>
    %105 = vector.broadcast %1 : vector<32x1xf32> to vector<32x16xf32>
    %106 = arith.addf %104, %105 : vector<32x16xf32>
    %cst_59 = arith.constant 0.000000e+00 : f32
    %107 = vector.broadcast %cst_59 : f32 to vector<32x16xf32>
    %108 = arith.maximumf %106, %107 : vector<32x16xf32>
    %109 = vector.broadcast %2 : vector<32x1xf32> to vector<32x16xf32>
    %110 = arith.mulf %109, %108 : vector<32x16xf32>
    %cst_60 = arith.constant dense<0.000000e+00> : vector<16xf32>
    %111 = vector.multi_reduction <add>, %110, %cst_60 [0] : vector<32x16xf32> to vector<16xf32>
    %112 = vector.shape_cast %111 : vector<16xf32> to vector<1x16xf32>
    %113 = vector.broadcast %3 : vector<1x1xf32> to vector<1x16xf32>
    %114 = arith.addf %112, %113 : vector<1x16xf32>
    %c7_61 = arith.constant 7 : index
    %c0_62 = arith.constant 0 : index
    %115 = vector.load %arg7[%c7_61, %c0_62] : memref<8x16xf32, #tpu.memory_space<vmem>>, vector<1x16xf32>
    tpu.vector_store %arg7[%c7_61, %c0_62], %114 {strides = array<i32>} : memref<8x16xf32, #tpu.memory_space<vmem>>, vector<1x16xf32>,
    %c0_63 = arith.constant 0 : index
    %c0_64 = arith.constant 0 : index
    %116 = vector.load %arg7[%c0_63, %c0_64] : memref<8x16xf32, #tpu.memory_space<vmem>>, vector<8x16xf32>
    %cst_65 = arith.constant dense<0xFF800000> : vector<8xf32>
    %117 = vector.multi_reduction <maximumf>, %116, %cst_65 [1] : vector<8x16xf32> to vector<8xf32>
    %118 = vector.shape_cast %117 : vector<8xf32> to vector<8x1xf32>
    %119 = vector.broadcast %118 : vector<8x1xf32> to vector<8x16xf32>
    %120 = arith.subf %116, %119 : vector<8x16xf32>
    %121 = math.exp %120 : vector<8x16xf32>
    %cst_66 = arith.constant dense<0.000000e+00> : vector<8xf32>
    %122 = vector.multi_reduction <add>, %121, %cst_66 [1] : vector<8x16xf32> to vector<8xf32>
    %123 = vector.shape_cast %122 : vector<8xf32> to vector<8x1xf32>
    %124 = tpu.reciprocal %123 {approx = true} : vector<8x1xf32> -> vector<8x1xf32>
    %125 = arith.mulf %123, %124 : vector<8x1xf32>
    %cst_67 = arith.constant 2.000000e+00 : f32
    %126 = vector.broadcast %cst_67 : f32 to vector<8x1xf32>
    %127 = arith.subf %126, %125 : vector<8x1xf32>
    %128 = arith.mulf %124, %127 : vector<8x1xf32>
    %129 = vector.broadcast %128 : vector<8x1xf32> to vector<8x16xf32>
    %130 = arith.mulf %121, %129 : vector<8x16xf32>
    %c0_68 = arith.constant 0 : index
    %c0_69 = arith.constant 0 : index
    %131 = vector.load %arg6[%c0_68, %c0_69] : memref<8x16xf32, #tpu.memory_space<vmem>>, vector<8x16xf32>
    tpu.vector_store %arg6[%c0_68, %c0_69], %130 {strides = array<i32>} : memref<8x16xf32, #tpu.memory_space<vmem>>, vector<8x16xf32>,
    return
  }
  func.func @transform_0(%arg0: i32) -> (i32, i32, i32) {
    %c0_i32 = arith.constant 0 : i32
    %c0_i32_0 = arith.constant 0 : i32
    %c0_i32_1 = arith.constant 0 : i32
    return %arg0, %c0_i32, %c0_i32_0 : i32, i32, i32
  }
  func.func @transform_1(%arg0: i32) -> (i32, i32) {
    %c0_i32 = arith.constant 0 : i32
    %c0_i32_0 = arith.constant 0 : i32
    %c0_i32_1 = arith.constant 0 : i32
    return %c0_i32, %c0_i32_0 : i32, i32
  }
  func.func @transform_2(%arg0: i32) -> (i32, i32) {
    %c0_i32 = arith.constant 0 : i32
    %c0_i32_0 = arith.constant 0 : i32
    %c0_i32_1 = arith.constant 0 : i32
    return %c0_i32, %c0_i32_0 : i32, i32
  }
  func.func @transform_3(%arg0: i32) -> (i32, i32) {
    %c0_i32 = arith.constant 0 : i32
    %c0_i32_0 = arith.constant 0 : i32
    %c0_i32_1 = arith.constant 0 : i32
    return %c0_i32, %c0_i32_0 : i32, i32
  }
  func.func @transform_4(%arg0: i32) -> (i32, i32) {
    %c0_i32 = arith.constant 0 : i32
    %c0_i32_0 = arith.constant 0 : i32
    %c0_i32_1 = arith.constant 0 : i32
    return %c0_i32, %c0_i32_0 : i32, i32
  }
  func.func @transform_5(%arg0: i32) -> (i32, i32) {
    %c0_i32 = arith.constant 0 : i32
    %c0_i32_0 = arith.constant 0 : i32
    return %arg0, %c0_i32 : i32, i32
  }
}

</mosaic_0001>

<llo_original>
// kernel: tpu_custom_call.1
$region0: #{tpu_custom_call.1}
  #allocation0 [shape = 'u32[]', space=smem, size = 0x4, offset = 0x4, fixed_abs, tag = 'smem constant byte address 0x4 - core index']
  #allocation1 [shape = 'u32[144,128]{1,0:T(1,128)}', space=vmem, size = 0x12000, scoped, tag = 'internal scratch']
  #allocation2 [shape = 'f32[8,16]{1,0:T(8,128)}', space=vmem, size = 0x1000, scoped, tag = 'scratch operand']
  #allocation3 [shape = 'f32[1,1]{1,0:T(1,128)S(1)}', space=vmem, size = 0x200, scoped, tag = 'scoped memory for tpu_custom_call.1']
  %s0 = inlined_call_operand.hbm [shape: f32[16,16,16], index: 0, kind: input, shape index: {}]
  %s1 = inlined_call_operand.vmem [shape: f32[32,16], index: 1, kind: input, shape index: {}]
  %s2 = inlined_call_operand.vmem [shape: f32[32,1], index: 2, kind: input, shape index: {}]
  %s3 = inlined_call_operand.vmem [shape: f32[32,1], index: 3, kind: input, shape index: {}]
  %s4 = inlined_call_operand.<no memory space> [shape: f32[1,1], index: 4, kind: input, shape index: {}]
  %s5 = inlined_call_operand.hbm [shape: f32[16,16], index: 5, kind: output, shape index: {}]
  %s6 = sld [smem:[#allocation0]]
  $region57: #{tpu_custom_call.1} parent=0
    _
  %s8 = ssub.s32 1, %s6
  %s9 = scalar_select 0, %s8, %s6
  %v10 = vstv %s4
  %11 = vst [vmem:[#allocation3] sm:$0x1] %v10
  $region1: #{tpu_custom_call.1} parent=0
    #allocation4 [shape = 'u8[131072]{0}', space=vmem, size = 0x20000, scoped, tag = 'input window, operand 0']
    #allocation5 [shape = 's32[2]{0}', space=sflag, size = 0x8, scoped, tag = 'scoped memory for tpu_custom_call.1']
    #allocation6 [shape = 's32[2]{0}', space=sflag, size = 0x8, scoped, tag = 'scoped memory for tpu_custom_call.1']
    #allocation7 [shape = 'u8[8192]{0}', space=vmem, size = 0x2000, scoped, tag = 'output window, operand 0']
    %12 = vsyncpa [#allocation5], 0
    %s13 = scalar_lea.sflag [#allocation5], 1
    %14 = vsyncpa %s13, 0
    %15 = vsyncpa [#allocation6], 0
    %s16 = scalar_lea.sflag [#allocation6], 1
    %17 = vsyncpa %s16, 0
    loop: start=0, step=1, limit=4
    $region2: #{tpu_custom_call.1} parent=1 // loop_pre_header
      _
    $region3: #{tpu_custom_call.1} parent=1 // loop_header
      %s19 = sphi 0, %s23
      %p20 = scmp.ge.s32.totalorder %s19, 4
      %s29 = sphi 0, %s31
      %s32 = sphi 0, %s29
      %s33 = sphi 0, %s32
      %s49 = sphi 0, %s33
      %s53 = sphi 0, %s53
      %s55 = sphi 0, %s53
      %s56 = sphi 0, %s55
      %s70 = sphi 0, %s56
      %s74 = sphi 0, %s74
      %s76 = sphi 0, %s74
      %s77 = sphi 0, %s76
      %s91 = sphi 0, %s77
      %s95 = sphi 0, %s95
      %s97 = sphi 0, %s95
      %s98 = sphi 0, %s97
      %s112 = sphi 0, %s98
      %s116 = sphi 0, %s116
      %s118 = sphi 0, %s116
      %s119 = sphi 0, %s118
      %s133 = sphi 0, %s119
      %s139 = sphi 0, %s141
      %s142 = sphi 0, %s139
      %s143 = sphi 0, %s142
      %s159 = sphi 0, %s143
    $region4: #{tpu_custom_call.1} parent=1 // loop_header_branch
      %22 = sbr.rel (%p20) target = $region8
    $region5: #{tpu_custom_call.1} parent=1 // loop_body
      %s24 = ssub.s32 %s19, 1
      %s25 = ssub.s32 %s19, 2
      %s26 = sadd.s32 %s19, 1
      %s27 = ssub.s32 %s19, %s26
      %p28 = scmp.eq.s32.totalorder %s27, 0
      %s30 = sadd.s32 %s29, 1
      %s31 = scalar_select %p28, %s29, %s30
      %p34 = pneg %p28
      %p35 = scmp.eq.s32.totalorder %s19, 1
      %p36 = por %p34, %p35
      %p37 = scmp.ne.s32.totalorder %s29, %s32
      %p38 = scmp.eq.s32.totalorder %s19, 0
      %p39 = por %p37, %p38
      %p40 = scmp.ne.s32.totalorder %s29, %s32
      %p41 = scmp.eq.s32.totalorder %s24, 1
      %p42 = por %p40, %p41
      %p43 = scmp.ne.s32.totalorder %s32, %s33
      %p44 = scmp.eq.s32.totalorder %s24, 0
      %p45 = por %p43, %p44
      %p46 = scmp.ne.s32.totalorder %s32, %s33
      %p47 = scmp.eq.s32.totalorder %s25, 1
      %p48 = por %p46, %p47
      %p50 = scmp.ne.s32.totalorder %s33, %s49
      %p51 = scmp.eq.s32.totalorder %s25, 0
      %p52 = por %p50, %p51
      %s54 = sadd.s32 %s53, 1
      %p57 = scmp.eq.s32.totalorder %s19, 1
      %p58 = scmp.ne.s32.totalorder %s53, %s55
      %p59 = scmp.eq.s32.totalorder %s19, 0
      %p60 = por %p58, %p59
      %p61 = scmp.ne.s32.totalorder %s53, %s55
      %p62 = scmp.eq.s32.totalorder %s24, 1
      %p63 = por %p61, %p62
      %p64 = scmp.ne.s32.totalorder %s55, %s56
      %p65 = scmp.eq.s32.totalorder %s24, 0
      %p66 = por %p64, %p65
      %p67 = scmp.ne.s32.totalorder %s55, %s56
      %p68 = scmp.eq.s32.totalorder %s25, 1
      %p69 = por %p67, %p68
      %p71 = scmp.ne.s32.totalorder %s56, %s70
      %p72 = scmp.eq.s32.totalorder %s25, 0
      %p73 = por %p71, %p72
      %s75 = sadd.s32 %s74, 1
      %p78 = scmp.eq.s32.totalorder %s19, 1
      %p79 = scmp.ne.s32.totalorder %s74, %s76
      %p80 = scmp.eq.s32.totalorder %s19, 0
      %p81 = por %p79, %p80
      %p82 = scmp.ne.s32.totalorder %s74, %s76
      %p83 = scmp.eq.s32.totalorder %s24, 1
      %p84 = por %p82, %p83
      %p85 = scmp.ne.s32.totalorder %s76, %s77
      %p86 = scmp.eq.s32.totalorder %s24, 0
      %p87 = por %p85, %p86
      %p88 = scmp.ne.s32.totalorder %s76, %s77
      %p89 = scmp.eq.s32.totalorder %s25, 1
      %p90 = por %p88, %p89
      %p92 = scmp.ne.s32.totalorder %s77, %s91
      %p93 = scmp.eq.s32.totalorder %s25, 0
      %p94 = por %p92, %p93
      %s96 = sadd.s32 %s95, 1
      %p99 = scmp.eq.s32.totalorder %s19, 1
      %p100 = scmp.ne.s32.totalorder %s95, %s97
      %p101 = scmp.eq.s32.totalorder %s19, 0
      %p102 = por %p100, %p101
      %p103 = scmp.ne.s32.totalorder %s95, %s97
      %p104 = scmp.eq.s32.totalorder %s24, 1
      %p105 = por %p103, %p104
      %p106 = scmp.ne.s32.totalorder %s97, %s98
      %p107 = scmp.eq.s32.totalorder %s24, 0
      %p108 = por %p106, %p107
      %p109 = scmp.ne.s32.totalorder %s97, %s98
      %p110 = scmp.eq.s32.totalorder %s25, 1
      %p111 = por %p109, %p110
      %p113 = scmp.ne.s32.totalorder %s98, %s112
      %p114 = scmp.eq.s32.totalorder %s25, 0
      %p115 = por %p113, %p114
      %s117 = sadd.s32 %s116, 1
      %p120 = scmp.eq.s32.totalorder %s19, 1
      %p121 = scmp.ne.s32.totalorder %s116, %s118
      %p122 = scmp.eq.s32.totalorder %s19, 0
      %p123 = por %p121, %p122
      %p124 = scmp.ne.s32.totalorder %s116, %s118
      %p125 = scmp.eq.s32.totalorder %s24, 1
      %p126 = por %p124, %p125
      %p127 = scmp.ne.s32.totalorder %s118, %s119
      %p128 = scmp.eq.s32.totalorder %s24, 0
      %p129 = por %p127, %p128
      %p130 = scmp.ne.s32.totalorder %s118, %s119
      %p131 = scmp.eq.s32.totalorder %s25, 1
      %p132 = por %p130, %p131
      %p134 = scmp.ne.s32.totalorder %s119, %s133
      %p135 = scmp.eq.s32.totalorder %s25, 0
      %p136 = por %p134, %p135
      %s137 = ssub.s32 %s19, %s26
      %p138 = scmp.eq.s32.totalorder %s137, 0
      %s140 = sadd.s32 %s139, 1
      %s141 = scalar_select %p138, %s139, %s140
      %p144 = pneg %p138
      %p145 = scmp.eq.s32.totalorder %s19, 1
      %p146 = por %p144, %p145
      %p147 = scmp.ne.s32.totalorder %s139, %s142
      %p148 = scmp.eq.s32.totalorder %s19, 0
      %p149 = por %p147, %p148
      %p150 = scmp.ne.s32.totalorder %s139, %s142
      %p151 = scmp.eq.s32.totalorder %s24, 1
      %p152 = por %p150, %p151
      %p153 = scmp.ne.s32.totalorder %s142, %s143
      %p154 = scmp.eq.s32.totalorder %s24, 0
      %p155 = por %p153, %p154
      %p156 = scmp.ne.s32.totalorder %s142, %s143
      %p157 = scmp.eq.s32.totalorder %s25, 1
      %p158 = por %p156, %p157
      %p160 = scmp.ne.s32.totalorder %s143, %s159
      %p161 = scmp.eq.s32.totalorder %s25, 0
      %p162 = por %p160, %p161
      %p163 = scmp.le.s32.totalorder 1, %s19
      %p164 = scmp.lt.s32.totalorder %s19, 3
      %p165 = pnand %p163, %p164
      %p166 = pneg %p165
      // Predicated region
      $region9: #{tpu_custom_call.1} parent=5 // pred_check
        _
      $region10: #{tpu_custom_call.1} parent=5 // pred_check_branch
        %168 = sbr.rel (%p165) target = $region12
      $region11: #{tpu_custom_call.1} parent=5 // pred_region
        %s169 = ssub.s32 %s19, 1
        // Predicated region
        $region13: #{tpu_custom_call.1} parent=11 // pred_check
          %p170 = pneg %p66
        $region14: #{tpu_custom_call.1} parent=11 // pred_check_branch
          %172 = sbr.rel (%p170) target = $region16
        $region15: #{tpu_custom_call.1} parent=11 // pred_region
          _
        $region16: #{tpu_custom_call.1} parent=11 // pred_fallthru
          _
        // Predicated region
        $region17: #{tpu_custom_call.1} parent=11 // pred_check
          %p173 = pneg %p87
        $region18: #{tpu_custom_call.1} parent=11 // pred_check_branch
          %175 = sbr.rel (%p173) target = $region20
        $region19: #{tpu_custom_call.1} parent=11 // pred_region
          _
        $region20: #{tpu_custom_call.1} parent=11 // pred_fallthru
          _
        // Predicated region
        $region21: #{tpu_custom_call.1} parent=11 // pred_check
          %p176 = pneg %p108
        $region22: #{tpu_custom_call.1} parent=11 // pred_check_branch
          %178 = sbr.rel (%p176) target = $region24
        $region23: #{tpu_custom_call.1} parent=11 // pred_region
          _
        $region24: #{tpu_custom_call.1} parent=11 // pred_fallthru
          _
        // Predicated region
        $region25: #{tpu_custom_call.1} parent=11 // pred_check
          %p179 = pneg %p129
        $region26: #{tpu_custom_call.1} parent=11 // pred_check_branch
          %181 = sbr.rel (%p179) target = $region28
        $region27: #{tpu_custom_call.1} parent=11 // pred_region
          _
        $region28: #{tpu_custom_call.1} parent=11 // pred_fallthru
          _
      $region12: #{tpu_custom_call.1} parent=5 // pred_fallthru
        _
      %p182 = scmp.lt.s32.totalorder %s19, 2
      // Predicated region
      $region29: #{tpu_custom_call.1} parent=5 // pred_check
        %p183 = pneg %p182
      $region30: #{tpu_custom_call.1} parent=5 // pred_check_branch
        %185 = sbr.rel (%p183) target = $region32
      $region31: #{tpu_custom_call.1} parent=5 // pred_region
        // Predicated region
        $region33: #{tpu_custom_call.1} parent=31 // pred_check
          %p186 = pneg %p39
        $region34: #{tpu_custom_call.1} parent=31 // pred_check_branch
          %188 = sbr.rel (%p186) target = $region36
        $region35: #{tpu_custom_call.1} parent=31 // pred_region
          %s189 = sand.u32 %s29, 1
          %s190 = scalar_lea.sflag [#allocation5], %s189
          %s191 = sand.u32 %s29, 1
          %s192 = smul.addr %s191, 128
          %s193 = scalar_lea.vmem [#allocation4], %s192
          %s194 = smul.u32 8, %s19
          %s196 = ssub.s32 2048, 2048
          %197 = vsyncadd %s190, %s196
          %s198 = smul.addr %s194, 2
          %s199 = smul.addr %s198, 128
          %s200 = scalar_lea.hbm %s0, %s199
          %s201 = sshll.u32 %s193, 4
          %s202 = int_to_ptr.vmem [resolvable:$true] %s201
          %207 = dma.hbm_to_vmem [thread:$0]  %s200, 2048, %s202, %s190, 128, 128, 8
        $region36: #{tpu_custom_call.1} parent=31 // pred_fallthru
          _
      $region32: #{tpu_custom_call.1} parent=5 // pred_fallthru
        _
      %p208 = scmp.le.s32.totalorder 1, %s19
      %p209 = scmp.lt.s32.totalorder %s19, 3
      %p210 = pnand %p208, %p209
      %p211 = pneg %p210
      // Predicated region
      $region37: #{tpu_custom_call.1} parent=5 // pred_check
        _
      $region38: #{tpu_custom_call.1} parent=5 // pred_check_branch
        %213 = sbr.rel (%p210) target = $region40
      $region39: #{tpu_custom_call.1} parent=5 // pred_region
        %s214 = ssub.s32 %s19, 1
        %s215 = sand.u32 %s32, 1
        %s216 = scalar_lea.sflag [#allocation5], %s215
        %s217 = sand.u32 %s32, 1
        %s218 = smul.addr %s217, 128
        %s219 = scalar_lea.vmem [#allocation4], %s218
        // Predicated region
        $region41: #{tpu_custom_call.1} parent=39 // pred_check
          %p220 = pneg %p45
        $region42: #{tpu_custom_call.1} parent=39 // pred_check_branch
          %222 = sbr.rel (%p220) target = $region44
        $region43: #{tpu_custom_call.1} parent=39 // pred_region
          %223 = dma.done %s216, 2048
        $region44: #{tpu_custom_call.1} parent=39 // pred_fallthru
          _
        %s224 = sand.u32 %s32, 1
        %s225 = scalar_lea.sflag [#allocation5], %s224
        %s226 = sand.u32 %s32, 1
        %s227 = smul.addr %s226, 128
        %s228 = scalar_lea.vmem [#allocation4], %s227
        %p229 = pneg %p45
        %p230 = pneg %p42
        %p231 = pneg %p66
        %p232 = pneg %p63
        %p233 = pneg %p87
        %p234 = pneg %p84
        %p235 = pneg %p108
        %p236 = pneg %p105
        %p237 = pneg %p129
        %p238 = pneg %p126
        %p239 = pneg %p155
        %p240 = pneg %p152
        %s241 = sand.u32 %s142, 1
        %s242 = scalar_lea.sflag [#allocation6], %s241
        %s243 = sand.u32 %s142, 1
        %s244 = smul.addr %s243, 8
        %s245 = scalar_lea.vmem [#allocation7], %s244
        %s246 = smul.u32 8, %s24
        %v247 = vld [vmem:[%s1] sm:$0xff]
        %v248 = vld [vmem:[%s1 + $0x8] sm:$0xff]
        %v249 = vld [vmem:[%s1 + $0x10] sm:$0xff]
        %v250 = vld [vmem:[%s1 + $0x18] sm:$0xff]
        %v251 = vld [vmem:[%s2] sm:$0xff]
        %v252 = vld [vmem:[%s2 + $0x8] sm:$0xff]
        %v253 = vld [vmem:[%s2 + $0x10] sm:$0xff]
        %v254 = vld [vmem:[%s2 + $0x18] sm:$0xff]
        %v255 = vld [vmem:[%s3] sm:$0xff]
        %v256 = vld [vmem:[%s3 + $0x8] sm:$0xff]
        %v257 = vld [vmem:[%s3 + $0x10] sm:$0xff]
        %v258 = vld [vmem:[%s3 + $0x18] sm:$0xff]
        %v259 = vld [vmem:[#allocation3] sm:$0x1]
        %v260 = vld [vmem:[%s219] sm:$0xff]
        %v261 = vld [vmem:[%s219 + $0x8] sm:$0xff]
        %263 = vset.pattern.permute.xlu0 0
        %264 = vperm.xlu0 %263, %v251
        %v265 = vpop.permute.xlu0 %264
        %268 = vset.pattern.permute.xlu0 0
        %269 = vperm.xlu0 %268, %v252
        %v270 = vpop.permute.xlu0 %269
        %273 = vset.pattern.permute.xlu0 0
        %274 = vperm.xlu0 %273, %v253
        %v275 = vpop.permute.xlu0 %274
        %278 = vset.pattern.permute.xlu0 0
        %279 = vperm.xlu0 %278, %v254
        %v280 = vpop.permute.xlu0 %279
        %vm282 = vcmask 130048
        %v284 = vsel %vm282, %v247, 0
        %v287 = vsel %vm282, %v248, 0
        %v290 = vsel %vm282, %v249, 0
        %v293 = vsel %vm282, %v250, 0
        %295 = vmatprep.subr.mxu0 0.0
        %296 = vmatpush1.msra.mxu0 %v260
        %297 = vmatprep.subr.mxu0 0.0
        %298 = vmatpush1.msra.mxu0 %v261
        %299 = vmatprep.subr.mxu0 0.0
        %300 = vmatpush1.msra.mxu0 0.0
        %301 = vmatprep.subr.mxu0 0.0
        %302 = vmatpush1.msra.mxu0 0.0
        %303 = vmatprep.subr.mxu0 0.0
        %304 = vmatpush1.msra.mxu0 0.0
        %305 = vmatprep.subr.mxu0 0.0
        %306 = vmatpush1.msra.mxu0 0.0
        %307 = vmatprep.subr.mxu0 0.0
        %308 = vmatpush1.msra.mxu0 0.0
        %309 = vmatprep.subr.mxu0 0.0
        %310 = vmatpush1.msra.mxu0 0.0
        %311 = vmatprep.subr.mxu0 0.0
        %312 = vmatpush1.msra.mxu0 0.0
        %313 = vmatprep.subr.mxu0 0.0
        %314 = vmatpush1.msra.mxu0 0.0
        %315 = vmatprep.subr.mxu0 0.0
        %316 = vmatpush1.msra.mxu0 0.0
        %317 = vmatprep.subr.mxu0 0.0
        %318 = vmatpush1.msra.mxu0 0.0
        %319 = vmatprep.subr.mxu0 0.0
        %320 = vmatpush1.msra.mxu0 0.0
        %321 = vmatprep.subr.mxu0 0.0
        %322 = vmatpush1.msra.mxu0 0.0
        %323 = vmatprep.subr.mxu0 0.0
        %324 = vmatpush1.msra.mxu0 0.0
        %325 = vmatprep.subr.mxu0 0.0
        %326 = vmatpush1.msra.mxu0 0.0
        %327 = vmatprep.subr.mxu0 0.0
        %328 = vmatpush1.msra.mxu0 0.0
        %329 = vmatprep.subr.mxu0 0.0
        %330 = vmatpush1.msra.mxu0 0.0
        %331 = vmatprep.subr.mxu0 0.0
        %332 = vmatpush1.msra.mxu0 0.0
        %333 = vmatprep.subr.mxu0 0.0
        %334 = vmatpush1.msra.mxu0 0.0
        %335 = vmatprep.subr.mxu0 0.0
        %336 = vmatpush1.msra.mxu0 0.0
        %337 = vmatprep.subr.mxu0 0.0
        %338 = vmatpush1.msra.mxu0 0.0
        %339 = vmatprep.subr.mxu0 0.0
        %340 = vmatpush1.msra.mxu0 0.0
        %341 = vmatprep.subr.mxu0 0.0
        %342 = vmatpush1.msra.mxu0 0.0
        %343 = vmatprep.subr.mxu0 0.0
        %344 = vmatpush1.msra.mxu0 0.0
        %345 = vmatprep.subr.mxu0 0.0
        %346 = vmatpush1.msra.mxu0 0.0
        %347 = vmatprep.subr.mxu0 0.0
        %348 = vmatpush1.msra.mxu0 0.0
        %349 = vmatprep.subr.mxu0 0.0
        %350 = vmatpush1.msra.mxu0 0.0
        %351 = vmatprep.subr.mxu0 0.0
        %352 = vmatpush1.msra.mxu0 0.0
        %353 = vmatprep.subr.mxu0 0.0
        %354 = vmatpush1.msra.mxu0 0.0
        %355 = vmatprep.subr.mxu0 0.0
        %356 = vmatpush1.msra.mxu0 0.0
        %357 = vmatprep.subr.mxu0 0.0
        %358 = vmatpush1.msra.mxu0 0.0
        %359 = vmatprep.mubr.f32.mxu0 0.0
        %360 = vmatmul.mubr.f32.gmra.mrb[0].mxu0 %v284
        %v361 = vpop.f32.mrb[0].mxu0
        %v362 = vadd.f32 %v265, %v361
        %v363 = vpop.f32.mrb[0].mxu0
        %364 = vmatprep.mubr.f32.mxu0 0.0
        %365 = vmatmul.mubr.f32.gmra.mrb[0].mxu0 %v287
        %v366 = vpop.f32.mrb[0].mxu0
        %v367 = vadd.f32 %v270, %v366
        %v368 = vpop.f32.mrb[0].mxu0
        %369 = vmatprep.mubr.f32.mxu0 0.0
        %370 = vmatmul.mubr.f32.gmra.mrb[0].mxu0 %v290
        %v371 = vpop.f32.mrb[0].mxu0
        %v372 = vadd.f32 %v275, %v371
        %v373 = vpop.f32.mrb[0].mxu0
        %374 = vmatprep.mubr.f32.mxu0 0.0
        %375 = vmatmul.mubr.f32.gmra.mrb[0].mxu0 %v293
        %v376 = vpop.f32.mrb[0].mxu0
        %v377 = vadd.f32 %v280, %v376
        %v378 = vpop.f32.mrb[0].mxu0
        %379 = vdwg.mxu0
        %v380 = vmax.f32 %v362, 0.0
        %v381 = vmax.f32 %v367, 0.0
        %v382 = vmax.f32 %v372, 0.0
        %v383 = vmax.f32 %v377, 0.0
        %385 = vset.pattern.permute.xlu0 0
        %386 = vperm.xlu0 %385, %v255
        %v387 = vpop.permute.xlu0 %386
        %390 = vset.pattern.permute.xlu0 0
        %391 = vperm.xlu0 %390, %v256
        %v392 = vpop.permute.xlu0 %391
        %395 = vset.pattern.permute.xlu0 0
        %396 = vperm.xlu0 %395, %v257
        %v397 = vpop.permute.xlu0 %396
        %400 = vset.pattern.permute.xlu0 0
        %401 = vperm.xlu0 %400, %v258
        %v402 = vpop.permute.xlu0 %401
        %v404 = vmul.f32 %v387, %v380
        %v405 = vmul.f32 %v392, %v381
        %v406 = vmul.f32 %v397, %v382
        %v407 = vmul.f32 %v402, %v383
        %v408 = vsel %vm282, %v404, 0.0
        %v409 = vsel %vm282, %v405, 0.0
        %v410 = vadd.f32 %v408, %v409
        %v411 = vsel %vm282, %v406, 0.0
        %v412 = vadd.f32 %v410, %v411
        %v413 = vsel %vm282, %v407, 0.0
        %v414 = vadd.f32 %v412, %v413
        %v415 = vrot.slane %v414, 4
        %v416 = vadd.f32 %v414, %v415
        %v417 = vrot.slane %v416, 2
        %v418 = vadd.f32 %v416, %v417
        %v419 = vrot.slane %v418, 1
        %v420 = vadd.f32 %v418, %v419
        %422 = vset.pattern.permute.xlu0 0
        %423 = vperm.xlu0 %422, %v259
        %v424 = vpop.permute.xlu0 %423
        %v426 = vlaneseq
        %v427 = vshrl.u32 %v426, 7
        %v428 = vsub.s32 0, %v427
        %v429 = vrot.slane %v424, %v428
        %v430 = vadd.f32 %v420, %v429
        %vm431 = vcmask 122880
        %432 = vst.msk [vmem:[#allocation2] sm:$0x1] %vm431, %v430
        %s433 = scalar_lea.vmem %s219, 16 [#allocation4]
        %v434 = vld [vmem:[%s433] sm:$0xff]
        %v435 = vld [vmem:[%s433 + $0x8] sm:$0xff]
        %436 = vmatprep.subr.mxu0 0.0
        %437 = vmatpush1.msra.mxu0 %v434
        %438 = vmatprep.subr.mxu0 0.0
        %439 = vmatpush1.msra.mxu0 %v435
        %440 = vmatprep.subr.mxu0 0.0
        %441 = vmatpush1.msra.mxu0 0.0
        %442 = vmatprep.subr.mxu0 0.0
        %443 = vmatpush1.msra.mxu0 0.0
        %444 = vmatprep.subr.mxu0 0.0
        %445 = vmatpush1.msra.mxu0 0.0
        %446 = vmatprep.subr.mxu0 0.0
        %447 = vmatpush1.msra.mxu0 0.0
        %448 = vmatprep.subr.mxu0 0.0
        %449 = vmatpush1.msra.mxu0 0.0
        %450 = vmatprep.subr.mxu0 0.0
        %451 = vmatpush1.msra.mxu0 0.0
        %452 = vmatprep.subr.mxu0 0.0
        %453 = vmatpush1.msra.mxu0 0.0
        %454 = vmatprep.subr.mxu0 0.0
        %455 = vmatpush1.msra.mxu0 0.0
        %456 = vmatprep.subr.mxu0 0.0
        %457 = vmatpush1.msra.mxu0 0.0
        %458 = vmatprep.subr.mxu0 0.0
        %459 = vmatpush1.msra.mxu0 0.0
        %460 = vmatprep.subr.mxu0 0.0
        %461 = vmatpush1.msra.mxu0 0.0
        %462 = vmatprep.subr.mxu0 0.0
        %463 = vmatpush1.msra.mxu0 0.0
        %464 = vmatprep.subr.mxu0 0.0
        %465 = vmatpush1.msra.mxu0 0.0
        %466 = vmatprep.subr.mxu0 0.0
        %467 = vmatpush1.msra.mxu0 0.0
        %468 = vmatprep.subr.mxu0 0.0
        %469 = vmatpush1.msra.mxu0 0.0
        %470 = vmatprep.subr.mxu0 0.0
        %471 = vmatpush1.msra.mxu0 0.0
        %472 = vmatprep.subr.mxu0 0.0
        %473 = vmatpush1.msra.mxu0 0.0
        %474 = vmatprep.subr.mxu0 0.0
        %475 = vmatpush1.msra.mxu0 0.0
        %476 = vmatprep.subr.mxu0 0.0
        %477 = vmatpush1.msra.mxu0 0.0
        %478 = vmatprep.subr.mxu0 0.0
        %479 = vmatpush1.msra.mxu0 0.0
        %480 = vmatprep.subr.mxu0 0.0
        %481 = vmatpush1.msra.mxu0 0.0
        %482 = vmatprep.subr.mxu0 0.0
        %483 = vmatpush1.msra.mxu0 0.0
        %484 = vmatprep.subr.mxu0 0.0
        %485 = vmatpush1.msra.mxu0 0.0
        %486 = vmatprep.subr.mxu0 0.0
        %487 = vmatpush1.msra.mxu0 0.0
        %488 = vmatprep.subr.mxu0 0.0
        %489 = vmatpush1.msra.mxu0 0.0
        %490 = vmatprep.subr.mxu0 0.0
        %491 = vmatpush1.msra.mxu0 0.0
        %492 = vmatprep.subr.mxu0 0.0
        %493 = vmatpush1.msra.mxu0 0.0
        %494 = vmatprep.subr.mxu0 0.0
        %495 = vmatpush1.msra.mxu0 0.0
        %496 = vmatprep.subr.mxu0 0.0
        %497 = vmatpush1.msra.mxu0 0.0
        %498 = vmatprep.subr.mxu0 0.0
        %499 = vmatpush1.msra.mxu0 0.0
        %500 = vmatprep.mubr.f32.mxu0 0.0
        %501 = vmatmul.mubr.f32.gmra.mrb[0].mxu0 %v284
        %v502 = vpop.f32.mrb[0].mxu0
        %v503 = vadd.f32 %v265, %v502
        %v504 = vpop.f32.mrb[0].mxu0
        %505 = vmatprep.mubr.f32.mxu0 0.0
        %506 = vmatmul.mubr.f32.gmra.mrb[0].mxu0 %v287
        %v507 = vpop.f32.mrb[0].mxu0
        %v508 = vadd.f32 %v270, %v507
        %v509 = vpop.f32.mrb[0].mxu0
        %510 = vmatprep.mubr.f32.mxu0 0.0
        %511 = vmatmul.mubr.f32.gmra.mrb[0].mxu0 %v290
        %v512 = vpop.f32.mrb[0].mxu0
        %v513 = vadd.f32 %v275, %v512
        %v514 = vpop.f32.mrb[0].mxu0
        %515 = vmatprep.mubr.f32.mxu0 0.0
        %516 = vmatmul.mubr.f32.gmra.mrb[0].mxu0 %v293
        %v517 = vpop.f32.mrb[0].mxu0
        %v518 = vadd.f32 %v280, %v517
        %v519 = vpop.f32.mrb[0].mxu0
        %520 = vdwg.mxu0
        %v521 = vmax.f32 %v503, 0.0
        %v522 = vmax.f32 %v508, 0.0
        %v523 = vmax.f32 %v513, 0.0
        %v524 = vmax.f32 %v518, 0.0
        %v525 = vmul.f32 %v387, %v521
        %v526 = vmul.f32 %v392, %v522
        %v527 = vmul.f32 %v397, %v523
        %v528 = vmul.f32 %v402, %v524
        %v529 = vsel %vm282, %v525, 0.0
        %v530 = vsel %vm282, %v526, 0.0
        %v531 = vadd.f32 %v529, %v530
        %v532 = vsel %vm282, %v527, 0.0
        %v533 = vadd.f32 %v531, %v532
        %v534 = vsel %vm282, %v528, 0.0
        %v535 = vadd.f32 %v533, %v534
        %v536 = vrot.slane %v535, 4
        %v537 = vadd.f32 %v535, %v536
        %v538 = vrot.slane %v537, 2
        %v539 = vadd.f32 %v537, %v538
        %v540 = vrot.slane %v539, 1
        %v541 = vadd.f32 %v539, %v540
        %v542 = vadd.f32 %v541, %v429
        %543 = vst.msk [vmem:[#allocation2 + $0x1] sm:$0x1] %vm431, %v542
        %s544 = scalar_lea.vmem %s219, 32 [#allocation4]
        %v545 = vld [vmem:[%s544] sm:$0xff]
        %v546 = vld [vmem:[%s544 + $0x8] sm:$0xff]
        %547 = vmatprep.subr.mxu0 0.0
        %548 = vmatpush1.msra.mxu0 %v545
        %549 = vmatprep.subr.mxu0 0.0
        %550 = vmatpush1.msra.mxu0 %v546
        %551 = vmatprep.subr.mxu0 0.0
        %552 = vmatpush1.msra.mxu0 0.0
        %553 = vmatprep.subr.mxu0 0.0
        %554 = vmatpush1.msra.mxu0 0.0
        %555 = vmatprep.subr.mxu0 0.0
        %556 = vmatpush1.msra.mxu0 0.0
        %557 = vmatprep.subr.mxu0 0.0
        %558 = vmatpush1.msra.mxu0 0.0
        %559 = vmatprep.subr.mxu0 0.0
        %560 = vmatpush1.msra.mxu0 0.0
        %561 = vmatprep.subr.mxu0 0.0
        %562 = vmatpush1.msra.mxu0 0.0
        %563 = vmatprep.subr.mxu0 0.0
        %564 = vmatpush1.msra.mxu0 0.0
        %565 = vmatprep.subr.mxu0 0.0
        %566 = vmatpush1.msra.mxu0 0.0
        %567 = vmatprep.subr.mxu0 0.0
        %568 = vmatpush1.msra.mxu0 0.0
        %569 = vmatprep.subr.mxu0 0.0
        %570 = vmatpush1.msra.mxu0 0.0
        %571 = vmatprep.subr.mxu0 0.0
        %572 = vmatpush1.msra.mxu0 0.0
        %573 = vmatprep.subr.mxu0 0.0
        %574 = vmatpush1.msra.mxu0 0.0
        %575 = vmatprep.subr.mxu0 0.0
        %576 = vmatpush1.msra.mxu0 0.0
        %577 = vmatprep.subr.mxu0 0.0
        %578 = vmatpush1.msra.mxu0 0.0
        %579 = vmatprep.subr.mxu0 0.0
        %580 = vmatpush1.msra.mxu0 0.0
        %581 = vmatprep.subr.mxu0 0.0
        %582 = vmatpush1.msra.mxu0 0.0
        %583 = vmatprep.subr.mxu0 0.0
        %584 = vmatpush1.msra.mxu0 0.0
        %585 = vmatprep.subr.mxu0 0.0
        %586 = vmatpush1.msra.mxu0 0.0
        %587 = vmatprep.subr.mxu0 0.0
        %588 = vmatpush1.msra.mxu0 0.0
        %589 = vmatprep.subr.mxu0 0.0
        %590 = vmatpush1.msra.mxu0 0.0
        %591 = vmatprep.subr.mxu0 0.0
        %592 = vmatpush1.msra.mxu0 0.0
        %593 = vmatprep.subr.mxu0 0.0
        %594 = vmatpush1.msra.mxu0 0.0
        %595 = vmatprep.subr.mxu0 0.0
        %596 = vmatpush1.msra.mxu0 0.0
        %597 = vmatprep.subr.mxu0 0.0
        %598 = vmatpush1.msra.mxu0 0.0
        %599 = vmatprep.subr.mxu0 0.0
        %600 = vmatpush1.msra.mxu0 0.0
        %601 = vmatprep.subr.mxu0 0.0
        %602 = vmatpush1.msra.mxu0 0.0
        %603 = vmatprep.subr.mxu0 0.0
        %604 = vmatpush1.msra.mxu0 0.0
        %605 = vmatprep.subr.mxu0 0.0
        %606 = vmatpush1.msra.mxu0 0.0
        %607 = vmatprep.subr.mxu0 0.0
        %608 = vmatpush1.msra.mxu0 0.0
        %609 = vmatprep.subr.mxu0 0.0
        %610 = vmatpush1.msra.mxu0 0.0
        %611 = vmatprep.mubr.f32.mxu0 0.0
        %612 = vmatmul.mubr.f32.gmra.mrb[0].mxu0 %v284
        %v613 = vpop.f32.mrb[0].mxu0
        %v614 = vadd.f32 %v265, %v613
        %v615 = vpop.f32.mrb[0].mxu0
        %616 = vmatprep.mubr.f32.mxu0 0.0
        %617 = vmatmul.mubr.f32.gmra.mrb[0].mxu0 %v287
        %v618 = vpop.f32.mrb[0].mxu0
        %v619 = vadd.f32 %v270, %v618
        %v620 = vpop.f32.mrb[0].mxu0
        %621 = vmatprep.mubr.f32.mxu0 0.0
        %622 = vmatmul.mubr.f32.gmra.mrb[0].mxu0 %v290
        %v623 = vpop.f32.mrb[0].mxu0
        %v624 = vadd.f32 %v275, %v623
        %v625 = vpop.f32.mrb[0].mxu0
        %626 = vmatprep.mubr.f32.mxu0 0.0
        %627 = vmatmul.mubr.f32.gmra.mrb[0].mxu0 %v293
        %v628 = vpop.f32.mrb[0].mxu0
        %v629 = vadd.f32 %v280, %v628
        %v630 = vpop.f32.mrb[0].mxu0
        %631 = vdwg.mxu0
        %v632 = vmax.f32 %v614, 0.0
        %v633 = vmax.f32 %v619, 0.0
        %v634 = vmax.f32 %v624, 0.0
        %v635 = vmax.f32 %v629, 0.0
        %v636 = vmul.f32 %v387, %v632
        %v637 = vmul.f32 %v392, %v633
        %v638 = vmul.f32 %v397, %v634
        %v639 = vmul.f32 %v402, %v635
        %v640 = vsel %vm282, %v636, 0.0
        %v641 = vsel %vm282, %v637, 0.0
        %v642 = vadd.f32 %v640, %v641
        %v643 = vsel %vm282, %v638, 0.0
        %v644 = vadd.f32 %v642, %v643
        %v645 = vsel %vm282, %v639, 0.0
        %v646 = vadd.f32 %v644, %v645
        %v647 = vrot.slane %v646, 4
        %v648 = vadd.f32 %v646, %v647
        %v649 = vrot.slane %v648, 2
        %v650 = vadd.f32 %v648, %v649
        %v651 = vrot.slane %v650, 1
        %v652 = vadd.f32 %v650, %v651
        %v653 = vadd.f32 %v652, %v429
        %654 = vst.msk [vmem:[#allocation2 + $0x2] sm:$0x1] %vm431, %v653
        %s655 = scalar_lea.vmem %s219, 48 [#allocation4]
        %v656 = vld [vmem:[%s655] sm:$0xff]
        %v657 = vld [vmem:[%s655 + $0x8] sm:$0xff]
        %658 = vmatprep.subr.mxu0 0.0
        %659 = vmatpush1.msra.mxu0 %v656
        %660 = vmatprep.subr.mxu0 0.0
        %661 = vmatpush1.msra.mxu0 %v657
        %662 = vmatprep.subr.mxu0 0.0
        %663 = vmatpush1.msra.mxu0 0.0
        %664 = vmatprep.subr.mxu0 0.0
        %665 = vmatpush1.msra.mxu0 0.0
        %666 = vmatprep.subr.mxu0 0.0
        %667 = vmatpush1.msra.mxu0 0.0
        %668 = vmatprep.subr.mxu0 0.0
        %669 = vmatpush1.msra.mxu0 0.0
        %670 = vmatprep.subr.mxu0 0.0
        %671 = vmatpush1.msra.mxu0 0.0
        %672 = vmatprep.subr.mxu0 0.0
        %673 = vmatpush1.msra.mxu0 0.0
        %674 = vmatprep.subr.mxu0 0.0
        %675 = vmatpush1.msra.mxu0 0.0
        %676 = vmatprep.subr.mxu0 0.0
        %677 = vmatpush1.msra.mxu0 0.0
        %678 = vmatprep.subr.mxu0 0.0
        %679 = vmatpush1.msra.mxu0 0.0
        %680 = vmatprep.subr.mxu0 0.0
        %681 = vmatpush1.msra.mxu0 0.0
        %682 = vmatprep.subr.mxu0 0.0
        %683 = vmatpush1.msra.mxu0 0.0
        %684 = vmatprep.subr.mxu0 0.0
        %685 = vmatpush1.msra.mxu0 0.0
        %686 = vmatprep.subr.mxu0 0.0
        %687 = vmatpush1.msra.mxu0 0.0
        %688 = vmatprep.subr.mxu0 0.0
        %689 = vmatpush1.msra.mxu0 0.0
        %690 = vmatprep.subr.mxu0 0.0
        %691 = vmatpush1.msra.mxu0 0.0
        %692 = vmatprep.subr.mxu0 0.0
        %693 = vmatpush1.msra.mxu0 0.0
        %694 = vmatprep.subr.mxu0 0.0
        %695 = vmatpush1.msra.mxu0 0.0
        %696 = vmatprep.subr.mxu0 0.0
        %697 = vmatpush1.msra.mxu0 0.0
        %698 = vmatprep.subr.mxu0 0.0
        %699 = vmatpush1.msra.mxu0 0.0
        %700 = vmatprep.subr.mxu0 0.0
        %701 = vmatpush1.msra.mxu0 0.0
        %702 = vmatprep.subr.mxu0 0.0
        %703 = vmatpush1.msra.mxu0 0.0
        %704 = vmatprep.subr.mxu0 0.0
        %705 = vmatpush1.msra.mxu0 0.0
        %706 = vmatprep.subr.mxu0 0.0
        %707 = vmatpush1.msra.mxu0 0.0
        %708 = vmatprep.subr.mxu0 0.0
        %709 = vmatpush1.msra.mxu0 0.0
        %710 = vmatprep.subr.mxu0 0.0
        %711 = vmatpush1.msra.mxu0 0.0
        %712 = vmatprep.subr.mxu0 0.0
        %713 = vmatpush1.msra.mxu0 0.0
        %714 = vmatprep.subr.mxu0 0.0
        %715 = vmatpush1.msra.mxu0 0.0
        %716 = vmatprep.subr.mxu0 0.0
        %717 = vmatpush1.msra.mxu0 0.0
        %718 = vmatprep.subr.mxu0 0.0
        %719 = vmatpush1.msra.mxu0 0.0
        %720 = vmatprep.subr.mxu0 0.0
        %721 = vmatpush1.msra.mxu0 0.0
        %722 = vmatprep.mubr.f32.mxu0 0.0
        %723 = vmatmul.mubr.f32.gmra.mrb[0].mxu0 %v284
        %v724 = vpop.f32.mrb[0].mxu0
        %v725 = vadd.f32 %v265, %v724
        %v726 = vpop.f32.mrb[0].mxu0
        %727 = vmatprep.mubr.f32.mxu0 0.0
        %728 = vmatmul.mubr.f32.gmra.mrb[0].mxu0 %v287
        %v729 = vpop.f32.mrb[0].mxu0
        %v730 = vadd.f32 %v270, %v729
        %v731 = vpop.f32.mrb[0].mxu0
        %732 = vmatprep.mubr.f32.mxu0 0.0
        %733 = vmatmul.mubr.f32.gmra.mrb[0].mxu0 %v290
        %v734 = vpop.f32.mrb[0].mxu0
        %v735 = vadd.f32 %v275, %v734
        %v736 = vpop.f32.mrb[0].mxu0
        %737 = vmatprep.mubr.f32.mxu0 0.0
        %738 = vmatmul.mubr.f32.gmra.mrb[0].mxu0 %v293
        %v739 = vpop.f32.mrb[0].mxu0
        %v740 = vadd.f32 %v280, %v739
        %v741 = vpop.f32.mrb[0].mxu0
        %742 = vdwg.mxu0
        %v743 = vmax.f32 %v725, 0.0
        %v744 = vmax.f32 %v730, 0.0
        %v745 = vmax.f32 %v735, 0.0
        %v746 = vmax.f32 %v740, 0.0
        %v747 = vmul.f32 %v387, %v743
        %v748 = vmul.f32 %v392, %v744
        %v749 = vmul.f32 %v397, %v745
        %v750 = vmul.f32 %v402, %v746
        %v751 = vsel %vm282, %v747, 0.0
        %v752 = vsel %vm282, %v748, 0.0
        %v753 = vadd.f32 %v751, %v752
        %v754 = vsel %vm282, %v749, 0.0
        %v755 = vadd.f32 %v753, %v754
        %v756 = vsel %vm282, %v750, 0.0
        %v757 = vadd.f32 %v755, %v756
        %v758 = vrot.slane %v757, 4
        %v759 = vadd.f32 %v757, %v758
        %v760 = vrot.slane %v759, 2
        %v761 = vadd.f32 %v759, %v760
        %v762 = vrot.slane %v761, 1
        %v763 = vadd.f32 %v761, %v762
        %v764 = vadd.f32 %v763, %v429
        %765 = vst.msk [vmem:[#allocation2 + $0x3] sm:$0x1] %vm431, %v764
        %s766 = scalar_lea.vmem %s219, 64 [#allocation4]
        %v767 = vld [vmem:[%s766] sm:$0xff]
        %v768 = vld [vmem:[%s766 + $0x8] sm:$0xff]
        %769 = vmatprep.subr.mxu0 0.0
        %770 = vmatpush1.msra.mxu0 %v767
        %771 = vmatprep.subr.mxu0 0.0
        %772 = vmatpush1.msra.mxu0 %v768
        %773 = vmatprep.subr.mxu0 0.0
        %774 = vmatpush1.msra.mxu0 0.0
        %775 = vmatprep.subr.mxu0 0.0
        %776 = vmatpush1.msra.mxu0 0.0
        %777 = vmatprep.subr.mxu0 0.0
        %778 = vmatpush1.msra.mxu0 0.0
        %779 = vmatprep.subr.mxu0 0.0
        %780 = vmatpush1.msra.mxu0 0.0
        %781 = vmatprep.subr.mxu0 0.0
        %782 = vmatpush1.msra.mxu0 0.0
        %783 = vmatprep.subr.mxu0 0.0
        %784 = vmatpush1.msra.mxu0 0.0
        %785 = vmatprep.subr.mxu0 0.0
        %786 = vmatpush1.msra.mxu0 0.0
        %787 = vmatprep.subr.mxu0 0.0
        %788 = vmatpush1.msra.mxu0 0.0
        %789 = vmatprep.subr.mxu0 0.0
        %790 = vmatpush1.msra.mxu0 0.0
        %791 = vmatprep.subr.mxu0 0.0
        %792 = vmatpush1.msra.mxu0 0.0
        %793 = vmatprep.subr.mxu0 0.0
        %794 = vmatpush1.msra.mxu0 0.0
        %795 = vmatprep.subr.mxu0 0.0
        %796 = vmatpush1.msra.mxu0 0.0
        %797 = vmatprep.subr.mxu0 0.0
        %798 = vmatpush1.msra.mxu0 0.0
        %799 = vmatprep.subr.mxu0 0.0
        %800 = vmatpush1.msra.mxu0 0.0
        %801 = vmatprep.subr.mxu0 0.0
        %802 = vmatpush1.msra.mxu0 0.0
        %803 = vmatprep.subr.mxu0 0.0
        %804 = vmatpush1.msra.mxu0 0.0
        %805 = vmatprep.subr.mxu0 0.0
        %806 = vmatpush1.msra.mxu0 0.0
        %807 = vmatprep.subr.mxu0 0.0
        %808 = vmatpush1.msra.mxu0 0.0
        %809 = vmatprep.subr.mxu0 0.0
        %810 = vmatpush1.msra.mxu0 0.0
        %811 = vmatprep.subr.mxu0 0.0
        %812 = vmatpush1.msra.mxu0 0.0
        %813 = vmatprep.subr.mxu0 0.0
        %814 = vmatpush1.msra.mxu0 0.0
        %815 = vmatprep.subr.mxu0 0.0
        %816 = vmatpush1.msra.mxu0 0.0
        %817 = vmatprep.subr.mxu0 0.0
        %818 = vmatpush1.msra.mxu0 0.0
        %819 = vmatprep.subr.mxu0 0.0
        %820 = vmatpush1.msra.mxu0 0.0
        %821 = vmatprep.subr.mxu0 0.0
        %822 = vmatpush1.msra.mxu0 0.0
        %823 = vmatprep.subr.mxu0 0.0
        %824 = vmatpush1.msra.mxu0 0.0
        %825 = vmatprep.subr.mxu0 0.0
        %826 = vmatpush1.msra.mxu0 0.0
        %827 = vmatprep.subr.mxu0 0.0
        %828 = vmatpush1.msra.mxu0 0.0
        %829 = vmatprep.subr.mxu0 0.0
        %830 = vmatpush1.msra.mxu0 0.0
        %831 = vmatprep.subr.mxu0 0.0
        %832 = vmatpush1.msra.mxu0 0.0
        %833 = vmatprep.mubr.f32.mxu0 0.0
        %834 = vmatmul.mubr.f32.gmra.mrb[0].mxu0 %v284
        %v835 = vpop.f32.mrb[0].mxu0
        %v836 = vadd.f32 %v265, %v835
        %v837 = vpop.f32.mrb[0].mxu0
        %838 = vmatprep.mubr.f32.mxu0 0.0
        %839 = vmatmul.mubr.f32.gmra.mrb[0].mxu0 %v287
        %v840 = vpop.f32.mrb[0].mxu0
        %v841 = vadd.f32 %v270, %v840
        %v842 = vpop.f32.mrb[0].mxu0
        %843 = vmatprep.mubr.f32.mxu0 0.0
        %844 = vmatmul.mubr.f32.gmra.mrb[0].mxu0 %v290
        %v845 = vpop.f32.mrb[0].mxu0
        %v846 = vadd.f32 %v275, %v845
        %v847 = vpop.f32.mrb[0].mxu0
        %848 = vmatprep.mubr.f32.mxu0 0.0
        %849 = vmatmul.mubr.f32.gmra.mrb[0].mxu0 %v293
        %v850 = vpop.f32.mrb[0].mxu0
        %v851 = vadd.f32 %v280, %v850
        %v852 = vpop.f32.mrb[0].mxu0
        %853 = vdwg.mxu0
        %v854 = vmax.f32 %v836, 0.0
        %v855 = vmax.f32 %v841, 0.0
        %v856 = vmax.f32 %v846, 0.0
        %v857 = vmax.f32 %v851, 0.0
        %v858 = vmul.f32 %v387, %v854
        %v859 = vmul.f32 %v392, %v855
        %v860 = vmul.f32 %v397, %v856
        %v861 = vmul.f32 %v402, %v857
        %v862 = vsel %vm282, %v858, 0.0
        %v863 = vsel %vm282, %v859, 0.0
        %v864 = vadd.f32 %v862, %v863
        %v865 = vsel %vm282, %v860, 0.0
        %v866 = vadd.f32 %v864, %v865
        %v867 = vsel %vm282, %v861, 0.0
        %v868 = vadd.f32 %v866, %v867
        %v869 = vrot.slane %v868, 4
        %v870 = vadd.f32 %v868, %v869
        %v871 = vrot.slane %v870, 2
        %v872 = vadd.f32 %v870, %v871
        %v873 = vrot.slane %v872, 1
        %v874 = vadd.f32 %v872, %v873
        %v875 = vadd.f32 %v874, %v429
        %876 = vst.msk [vmem:[#allocation2 + $0x4] sm:$0x1] %vm431, %v875
        %s877 = scalar_lea.vmem %s219, 80 [#allocation4]
        %v878 = vld [vmem:[%s877] sm:$0xff]
        %v879 = vld [vmem:[%s877 + $0x8] sm:$0xff]
        %880 = vmatprep.subr.mxu0 0.0
        %881 = vmatpush1.msra.mxu0 %v878
        %882 = vmatprep.subr.mxu0 0.0
        %883 = vmatpush1.msra.mxu0 %v879
        %884 = vmatprep.subr.mxu0 0.0
        %885 = vmatpush1.msra.mxu0 0.0
        %886 = vmatprep.subr.mxu0 0.0
        %887 = vmatpush1.msra.mxu0 0.0
        %888 = vmatprep.subr.mxu0 0.0
        %889 = vmatpush1.msra.mxu0 0.0
        %890 = vmatprep.subr.mxu0 0.0
        %891 = vmatpush1.msra.mxu0 0.0
        %892 = vmatprep.subr.mxu0 0.0
        %893 = vmatpush1.msra.mxu0 0.0
        %894 = vmatprep.subr.mxu0 0.0
        %895 = vmatpush1.msra.mxu0 0.0
        %896 = vmatprep.subr.mxu0 0.0
        %897 = vmatpush1.msra.mxu0 0.0
        %898 = vmatprep.subr.mxu0 0.0
        %899 = vmatpush1.msra.mxu0 0.0
        %900 = vmatprep.subr.mxu0 0.0
        %901 = vmatpush1.msra.mxu0 0.0
        %902 = vmatprep.subr.mxu0 0.0
        %903 = vmatpush1.msra.mxu0 0.0
        %904 = vmatprep.subr.mxu0 0.0
        %905 = vmatpush1.msra.mxu0 0.0
        %906 = vmatprep.subr.mxu0 0.0
        %907 = vmatpush1.msra.mxu0 0.0
        %908 = vmatprep.subr.mxu0 0.0
        %909 = vmatpush1.msra.mxu0 0.0
        %910 = vmatprep.subr.mxu0 0.0
        %911 = vmatpush1.msra.mxu0 0.0
        %912 = vmatprep.subr.mxu0 0.0
        %913 = vmatpush1.msra.mxu0 0.0
        %914 = vmatprep.subr.mxu0 0.0
        %915 = vmatpush1.msra.mxu0 0.0
        %916 = vmatprep.subr.mxu0 0.0
        %917 = vmatpush1.msra.mxu0 0.0
        %918 = vmatprep.subr.mxu0 0.0
        %919 = vmatpush1.msra.mxu0 0.0
        %920 = vmatprep.subr.mxu0 0.0
        %921 = vmatpush1.msra.mxu0 0.0
        %922 = vmatprep.subr.mxu0 0.0
        %923 = vmatpush1.msra.mxu0 0.0
        %924 = vmatprep.subr.mxu0 0.0
        %925 = vmatpush1.msra.mxu0 0.0
        %926 = vmatprep.subr.mxu0 0.0
        %927 = vmatpush1.msra.mxu0 0.0
        %928 = vmatprep.subr.mxu0 0.0
        %929 = vmatpush1.msra.mxu0 0.0
        %930 = vmatprep.subr.mxu0 0.0
        %931 = vmatpush1.msra.mxu0 0.0
        %932 = vmatprep.subr.mxu0 0.0
        %933 = vmatpush1.msra.mxu0 0.0
        %934 = vmatprep.subr.mxu0 0.0
        %935 = vmatpush1.msra.mxu0 0.0
        %936 = vmatprep.subr.mxu0 0.0
        %937 = vmatpush1.msra.mxu0 0.0
        %938 = vmatprep.subr.mxu0 0.0
        %939 = vmatpush1.msra.mxu0 0.0
        %940 = vmatprep.subr.mxu0 0.0
        %941 = vmatpush1.msra.mxu0 0.0
        %942 = vmatprep.subr.mxu0 0.0
        %943 = vmatpush1.msra.mxu0 0.0
        %944 = vmatprep.mubr.f32.mxu0 0.0
        %945 = vmatmul.mubr.f32.gmra.mrb[0].mxu0 %v284
        %v946 = vpop.f32.mrb[0].mxu0
        %v947 = vadd.f32 %v265, %v946
        %v948 = vpop.f32.mrb[0].mxu0
        %949 = vmatprep.mubr.f32.mxu0 0.0
        %950 = vmatmul.mubr.f32.gmra.mrb[0].mxu0 %v287
        %v951 = vpop.f32.mrb[0].mxu0
        %v952 = vadd.f32 %v270, %v951
        %v953 = vpop.f32.mrb[0].mxu0
        %954 = vmatprep.mubr.f32.mxu0 0.0
        %955 = vmatmul.mubr.f32.gmra.mrb[0].mxu0 %v290
        %v956 = vpop.f32.mrb[0].mxu0
        %v957 = vadd.f32 %v275, %v956
        %v958 = vpop.f32.mrb[0].mxu0
        %959 = vmatprep.mubr.f32.mxu0 0.0
        %960 = vmatmul.mubr.f32.gmra.mrb[0].mxu0 %v293
        %v961 = vpop.f32.mrb[0].mxu0
        %v962 = vadd.f32 %v280, %v961
        %v963 = vpop.f32.mrb[0].mxu0
        %964 = vdwg.mxu0
        %v965 = vmax.f32 %v947, 0.0
        %v966 = vmax.f32 %v952, 0.0
        %v967 = vmax.f32 %v957, 0.0
        %v968 = vmax.f32 %v962, 0.0
        %v969 = vmul.f32 %v387, %v965
        %v970 = vmul.f32 %v392, %v966
        %v971 = vmul.f32 %v397, %v967
        %v972 = vmul.f32 %v402, %v968
        %v973 = vsel %vm282, %v969, 0.0
        %v974 = vsel %vm282, %v970, 0.0
        %v975 = vadd.f32 %v973, %v974
        %v976 = vsel %vm282, %v971, 0.0
        %v977 = vadd.f32 %v975, %v976
        %v978 = vsel %vm282, %v972, 0.0
        %v979 = vadd.f32 %v977, %v978
        %v980 = vrot.slane %v979, 4
        %v981 = vadd.f32 %v979, %v980
        %v982 = vrot.slane %v981, 2
        %v983 = vadd.f32 %v981, %v982
        %v984 = vrot.slane %v983, 1
        %v985 = vadd.f32 %v983, %v984
        %v986 = vadd.f32 %v985, %v429
        %987 = vst.msk [vmem:[#allocation2 + $0x5] sm:$0x1] %vm431, %v986
        %s988 = scalar_lea.vmem %s219, 96 [#allocation4]
        %v989 = vld [vmem:[%s988] sm:$0xff]
        %v990 = vld [vmem:[%s988 + $0x8] sm:$0xff]
        %991 = vmatprep.subr.mxu0 0.0
        %992 = vmatpush1.msra.mxu0 %v989
        %993 = vmatprep.subr.mxu0 0.0
        %994 = vmatpush1.msra.mxu0 %v990
        %995 = vmatprep.subr.mxu0 0.0
        %996 = vmatpush1.msra.mxu0 0.0
        %997 = vmatprep.subr.mxu0 0.0
        %998 = vmatpush1.msra.mxu0 0.0
        %999 = vmatprep.subr.mxu0 0.0
        %1000 = vmatpush1.msra.mxu0 0.0
        %1001 = vmatprep.subr.mxu0 0.0
        %1002 = vmatpush1.msra.mxu0 0.0
        %1003 = vmatprep.subr.mxu0 0.0
        %1004 = vmatpush1.msra.mxu0 0.0
        %1005 = vmatprep.subr.mxu0 0.0
        %1006 = vmatpush1.msra.mxu0 0.0
        %1007 = vmatprep.subr.mxu0 0.0
        %1008 = vmatpush1.msra.mxu0 0.0
        %1009 = vmatprep.subr.mxu0 0.0
        %1010 = vmatpush1.msra.mxu0 0.0
        %1011 = vmatprep.subr.mxu0 0.0
        %1012 = vmatpush1.msra.mxu0 0.0
        %1013 = vmatprep.subr.mxu0 0.0
        %1014 = vmatpush1.msra.mxu0 0.0
        %1015 = vmatprep.subr.mxu0 0.0
        %1016 = vmatpush1.msra.mxu0 0.0
        %1017 = vmatprep.subr.mxu0 0.0
        %1018 = vmatpush1.msra.mxu0 0.0
        %1019 = vmatprep.subr.mxu0 0.0
        %1020 = vmatpush1.msra.mxu0 0.0
        %1021 = vmatprep.subr.mxu0 0.0
        %1022 = vmatpush1.msra.mxu0 0.0
        %1023 = vmatprep.subr.mxu0 0.0
        %1024 = vmatpush1.msra.mxu0 0.0
        %1025 = vmatprep.subr.mxu0 0.0
        %1026 = vmatpush1.msra.mxu0 0.0
        %1027 = vmatprep.subr.mxu0 0.0
        %1028 = vmatpush1.msra.mxu0 0.0
        %1029 = vmatprep.subr.mxu0 0.0
        %1030 = vmatpush1.msra.mxu0 0.0
        %1031 = vmatprep.subr.mxu0 0.0
        %1032 = vmatpush1.msra.mxu0 0.0
        %1033 = vmatprep.subr.mxu0 0.0
        %1034 = vmatpush1.msra.mxu0 0.0
        %1035 = vmatprep.subr.mxu0 0.0
        %1036 = vmatpush1.msra.mxu0 0.0
        %1037 = vmatprep.subr.mxu0 0.0
        %1038 = vmatpush1.msra.mxu0 0.0
        %1039 = vmatprep.subr.mxu0 0.0
        %1040 = vmatpush1.msra.mxu0 0.0
        %1041 = vmatprep.subr.mxu0 0.0
        %1042 = vmatpush1.msra.mxu0 0.0
        %1043 = vmatprep.subr.mxu0 0.0
        %1044 = vmatpush1.msra.mxu0 0.0
        %1045 = vmatprep.subr.mxu0 0.0
        %1046 = vmatpush1.msra.mxu0 0.0
        %1047 = vmatprep.subr.mxu0 0.0
        %1048 = vmatpush1.msra.mxu0 0.0
        %1049 = vmatprep.subr.mxu0 0.0
        %1050 = vmatpush1.msra.mxu0 0.0
        %1051 = vmatprep.subr.mxu0 0.0
        %1052 = vmatpush1.msra.mxu0 0.0
        %1053 = vmatprep.subr.mxu0 0.0
        %1054 = vmatpush1.msra.mxu0 0.0
        %1055 = vmatprep.mubr.f32.mxu0 0.0
        %1056 = vmatmul.mubr.f32.gmra.mrb[0].mxu0 %v284
        %v1057 = vpop.f32.mrb[0].mxu0
        %v1058 = vadd.f32 %v265, %v1057
        %v1059 = vpop.f32.mrb[0].mxu0
        %1060 = vmatprep.mubr.f32.mxu0 0.0
        %1061 = vmatmul.mubr.f32.gmra.mrb[0].mxu0 %v287
        %v1062 = vpop.f32.mrb[0].mxu0
        %v1063 = vadd.f32 %v270, %v1062
        %v1064 = vpop.f32.mrb[0].mxu0
        %1065 = vmatprep.mubr.f32.mxu0 0.0
        %1066 = vmatmul.mubr.f32.gmra.mrb[0].mxu0 %v290
        %v1067 = vpop.f32.mrb[0].mxu0
        %v1068 = vadd.f32 %v275, %v1067
        %v1069 = vpop.f32.mrb[0].mxu0
        %1070 = vmatprep.mubr.f32.mxu0 0.0
        %1071 = vmatmul.mubr.f32.gmra.mrb[0].mxu0 %v293
        %v1072 = vpop.f32.mrb[0].mxu0
        %v1073 = vadd.f32 %v280, %v1072
        %v1074 = vpop.f32.mrb[0].mxu0
        %1075 = vdwg.mxu0
        %v1076 = vmax.f32 %v1058, 0.0
        %v1077 = vmax.f32 %v1063, 0.0
        %v1078 = vmax.f32 %v1068, 0.0
        %v1079 = vmax.f32 %v1073, 0.0
        %v1080 = vmul.f32 %v387, %v1076
        %v1081 = vmul.f32 %v392, %v1077
        %v1082 = vmul.f32 %v397, %v1078
        %v1083 = vmul.f32 %v402, %v1079
        %v1084 = vsel %vm282, %v1080, 0.0
        %v1085 = vsel %vm282, %v1081, 0.0
        %v1086 = vadd.f32 %v1084, %v1085
        %v1087 = vsel %vm282, %v1082, 0.0
        %v1088 = vadd.f32 %v1086, %v1087
        %v1089 = vsel %vm282, %v1083, 0.0
        %v1090 = vadd.f32 %v1088, %v1089
        %v1091 = vrot.slane %v1090, 4
        %v1092 = vadd.f32 %v1090, %v1091
        %v1093 = vrot.slane %v1092, 2
        %v1094 = vadd.f32 %v1092, %v1093
        %v1095 = vrot.slane %v1094, 1
        %v1096 = vadd.f32 %v1094, %v1095
        %v1097 = vadd.f32 %v1096, %v429
        %1098 = vst.msk [vmem:[#allocation2 + $0x6] sm:$0x1] %vm431, %v1097
        %s1099 = scalar_lea.vmem %s219, 112 [#allocation4]
        %v1100 = vld [vmem:[%s1099] sm:$0xff]
        %v1101 = vld [vmem:[%s1099 + $0x8] sm:$0xff]
        %1102 = vmatprep.subr.mxu0 0.0
        %1103 = vmatpush1.msra.mxu0 %v1100
        %1104 = vmatprep.subr.mxu0 0.0
        %1105 = vmatpush1.msra.mxu0 %v1101
        %1106 = vmatprep.subr.mxu0 0.0
        %1107 = vmatpush1.msra.mxu0 0.0
        %1108 = vmatprep.subr.mxu0 0.0
        %1109 = vmatpush1.msra.mxu0 0.0
        %1110 = vmatprep.subr.mxu0 0.0
        %1111 = vmatpush1.msra.mxu0 0.0
        %1112 = vmatprep.subr.mxu0 0.0
        %1113 = vmatpush1.msra.mxu0 0.0
        %1114 = vmatprep.subr.mxu0 0.0
        %1115 = vmatpush1.msra.mxu0 0.0
        %1116 = vmatprep.subr.mxu0 0.0
        %1117 = vmatpush1.msra.mxu0 0.0
        %1118 = vmatprep.subr.mxu0 0.0
        %1119 = vmatpush1.msra.mxu0 0.0
        %1120 = vmatprep.subr.mxu0 0.0
        %1121 = vmatpush1.msra.mxu0 0.0
        %1122 = vmatprep.subr.mxu0 0.0
        %1123 = vmatpush1.msra.mxu0 0.0
        %1124 = vmatprep.subr.mxu0 0.0
        %1125 = vmatpush1.msra.mxu0 0.0
        %1126 = vmatprep.subr.mxu0 0.0
        %1127 = vmatpush1.msra.mxu0 0.0
        %1128 = vmatprep.subr.mxu0 0.0
        %1129 = vmatpush1.msra.mxu0 0.0
        %1130 = vmatprep.subr.mxu0 0.0
        %1131 = vmatpush1.msra.mxu0 0.0
        %1132 = vmatprep.subr.mxu0 0.0
        %1133 = vmatpush1.msra.mxu0 0.0
        %1134 = vmatprep.subr.mxu0 0.0
        %1135 = vmatpush1.msra.mxu0 0.0
        %1136 = vmatprep.subr.mxu0 0.0
        %1137 = vmatpush1.msra.mxu0 0.0
        %1138 = vmatprep.subr.mxu0 0.0
        %1139 = vmatpush1.msra.mxu0 0.0
        %1140 = vmatprep.subr.mxu0 0.0
        %1141 = vmatpush1.msra.mxu0 0.0
        %1142 = vmatprep.subr.mxu0 0.0
        %1143 = vmatpush1.msra.mxu0 0.0
        %1144 = vmatprep.subr.mxu0 0.0
        %1145 = vmatpush1.msra.mxu0 0.0
        %1146 = vmatprep.subr.mxu0 0.0
        %1147 = vmatpush1.msra.mxu0 0.0
        %1148 = vmatprep.subr.mxu0 0.0
        %1149 = vmatpush1.msra.mxu0 0.0
        %1150 = vmatprep.subr.mxu0 0.0
        %1151 = vmatpush1.msra.mxu0 0.0
        %1152 = vmatprep.subr.mxu0 0.0
        %1153 = vmatpush1.msra.mxu0 0.0
        %1154 = vmatprep.subr.mxu0 0.0
        %1155 = vmatpush1.msra.mxu0 0.0
        %1156 = vmatprep.subr.mxu0 0.0
        %1157 = vmatpush1.msra.mxu0 0.0
        %1158 = vmatprep.subr.mxu0 0.0
        %1159 = vmatpush1.msra.mxu0 0.0
        %1160 = vmatprep.subr.mxu0 0.0
        %1161 = vmatpush1.msra.mxu0 0.0
        %1162 = vmatprep.subr.mxu0 0.0
        %1163 = vmatpush1.msra.mxu0 0.0
        %1164 = vmatprep.subr.mxu0 0.0
        %1165 = vmatpush1.msra.mxu0 0.0
        %1166 = vmatprep.mubr.f32.mxu0 0.0
        %1167 = vmatmul.mubr.f32.gmra.mrb[0].mxu0 %v284
        %v1168 = vpop.f32.mrb[0].mxu0
        %v1169 = vadd.f32 %v265, %v1168
        %v1170 = vpop.f32.mrb[0].mxu0
        %1171 = vmatprep.mubr.f32.mxu0 0.0
        %1172 = vmatmul.mubr.f32.gmra.mrb[0].mxu0 %v287
        %v1173 = vpop.f32.mrb[0].mxu0
        %v1174 = vadd.f32 %v270, %v1173
        %v1175 = vpop.f32.mrb[0].mxu0
        %1176 = vmatprep.mubr.f32.mxu0 0.0
        %1177 = vmatmul.mubr.f32.gmra.mrb[0].mxu0 %v290
        %v1178 = vpop.f32.mrb[0].mxu0
        %v1179 = vadd.f32 %v275, %v1178
        %v1180 = vpop.f32.mrb[0].mxu0
        %1181 = vmatprep.mubr.f32.mxu0 0.0
        %1182 = vmatmul.mubr.f32.gmra.mrb[0].mxu0 %v293
        %v1183 = vpop.f32.mrb[0].mxu0
        %v1184 = vadd.f32 %v280, %v1183
        %v1185 = vpop.f32.mrb[0].mxu0
        %1186 = vdwg.mxu0
        %v1187 = vmax.f32 %v1169, 0.0
        %v1188 = vmax.f32 %v1174, 0.0
        %v1189 = vmax.f32 %v1179, 0.0
        %v1190 = vmax.f32 %v1184, 0.0
        %v1191 = vmul.f32 %v387, %v1187
        %v1192 = vmul.f32 %v392, %v1188
        %v1193 = vmul.f32 %v397, %v1189
        %v1194 = vmul.f32 %v402, %v1190
        %v1195 = vsel %vm282, %v1191, 0.0
        %v1196 = vsel %vm282, %v1192, 0.0
        %v1197 = vadd.f32 %v1195, %v1196
        %v1198 = vsel %vm282, %v1193, 0.0
        %v1199 = vadd.f32 %v1197, %v1198
        %v1200 = vsel %vm282, %v1194, 0.0
        %v1201 = vadd.f32 %v1199, %v1200
        %v1202 = vrot.slane %v1201, 4
        %v1203 = vadd.f32 %v1201, %v1202
        %v1204 = vrot.slane %v1203, 2
        %v1205 = vadd.f32 %v1203, %v1204
        %v1206 = vrot.slane %v1205, 1
        %v1207 = vadd.f32 %v1205, %v1206
        %v1208 = vadd.f32 %v1207, %v429
        %1209 = vst.msk [vmem:[#allocation2 + $0x7] sm:$0x1] %vm431, %v1208
        %v1210 = vld [vmem:[#allocation2] sm:$0xff]
        %v1211 = vsel %vm282, %v1210, -inf
        %1212 = vmax.xlane.f32.xlu0 %v1211
        %v1213 = vpop.xlane.xlu0 %1212
        %v1214 = vsub.f32 %v1210, %v1213
        %v1215 = vmul.f32 %v1214, 1.442695
        %v1216 = vpow.pop %v1215
        %v1217 = vsel %vm282, %v1216, 0.0
        %1218 = vadd.xlane.f32.xlu0 %v1217
        %v1219 = vpop.xlane.xlu0 %1218
        %v1220 = vrcp.pop %v1219
        %v1221 = vmul.f32 %v1219, %v1220
        %v1222 = vsub.f32 2.0, %v1221
        %v1223 = vmul.f32 %v1220, %v1222
        %v1224 = vmul.f32 %v1216, %v1223
        %1225 = vst.msk [vmem:[%s245] sm:$0xff] %vm282, %v1224
        %s1226 = sand.u32 %s142, 1
        %s1227 = scalar_lea.sflag [#allocation6], %s1226
        %s1228 = sand.u32 %s142, 1
        %s1229 = smul.addr %s1228, 8
        %s1230 = scalar_lea.vmem [#allocation7], %s1229
        // Predicated region
        $region45: #{tpu_custom_call.1} parent=39 // pred_check
          %p1231 = pneg %p152
        $region46: #{tpu_custom_call.1} parent=39 // pred_check_branch
          %1233 = sbr.rel (%p1231) target = $region48
        $region47: #{tpu_custom_call.1} parent=39 // pred_region
          %s1235 = ssub.s32 128, 128
          %1236 = vsyncadd %s1227, %s1235
          %s1237 = smul.addr %s24, 128
          %s1238 = scalar_lea.hbm %s5, %s1237
          %s1240 = sshll.u32 %s1230, 4
          %s1241 = int_to_ptr.vmem [resolvable:$true] %s1240
          %1243 = dma.vmem_to_hbm [thread:$0]  %s1241, 128, %s1238, %s1227
        $region48: #{tpu_custom_call.1} parent=39 // pred_fallthru
          _
      $region40: #{tpu_custom_call.1} parent=5 // pred_fallthru
        _
      %p1244 = scmp.le.s32.totalorder 2, %s19
      // Predicated region
      $region49: #{tpu_custom_call.1} parent=5 // pred_check
        %p1245 = pneg %p1244
      $region50: #{tpu_custom_call.1} parent=5 // pred_check_branch
        %1247 = sbr.rel (%p1245) target = $region52
      $region51: #{tpu_custom_call.1} parent=5 // pred_region
        %s1248 = ssub.s32 %s19, 2
        // Predicated region
        $region53: #{tpu_custom_call.1} parent=51 // pred_check
          %p1249 = pneg %p158
        $region54: #{tpu_custom_call.1} parent=51 // pred_check_branch
          %1251 = sbr.rel (%p1249) target = $region56
        $region55: #{tpu_custom_call.1} parent=51 // pred_region
          %s1252 = sand.u32 %s143, 1
          %s1253 = scalar_lea.sflag [#allocation6], %s1252
          %s1254 = sand.u32 %s143, 1
          %s1255 = smul.addr %s1254, 8
          %s1256 = scalar_lea.vmem [#allocation7], %s1255
          %1257 = dma.done %s1253, 128
        $region56: #{tpu_custom_call.1} parent=51 // pred_fallthru
          _
      $region52: #{tpu_custom_call.1} parent=5 // pred_fallthru
        _
    $region6: #{tpu_custom_call.1} parent=1 // loop_footer
      %s23 = sadd.s32 1, %s19
    $region7: #{tpu_custom_call.1} parent=1 // loop_footer_branch
      %18 = sbr.rel target = $region3
    $region8: #{tpu_custom_call.1} parent=1 // loop_exit
      _
    %1258 = vsyncpa [#allocation5], 1
    %s1259 = scalar_lea.sflag [#allocation5], 1
    %1260 = vsyncpa %s1259, 1
    %1261 = vsyncpa [#allocation6], 1
    %s1262 = scalar_lea.sflag [#allocation6], 1
    %1263 = vsyncpa %s1262, 1

</llo_original>
